<compile_context>
chip_gen: v7x
topology: tpu7x:2x2x1
jax: 0.10.0
libtpu: 0.0.40
codegen_flags: <defaults>
</compile_context>

<pallas_src>
import jax
import jax.numpy as jnp
import numpy as np
from jax.experimental import pallas as pl
from jax.experimental.pallas import tpu as pltpu

NORMALIZE_EMBEDDINGS = True
NON_LINEARITY = True
_EPS = 1e-12  # matches F.normalize default eps

# Weight storage / MXU operand dtype.  bf16 halves weight DMA and doubles MXU
# rate on v6e/v7x.  Set to jnp.float32 for bit-exact torch-module numerics
# (and tighten the test tolerance back to 1e-5).
WEIGHT_DTYPE = jnp.bfloat16


def _l2_normalize(x):
    # F.normalize(x, p=2, dim=1): x / max(||x||_2, eps).
    # rsqrt(max(sumsq, eps^2)) == 1 / max(norm, eps); rsqrt runs on the EUP
    # slot and the divide becomes a VPU multiply.
    sumsq = jnp.sum(x * x, axis=-1, keepdims=True)
    inv = jax.lax.rsqrt(jnp.maximum(sumsq, _EPS * _EPS))
    return x * inv


def _ranker_kernel(w1_ref, w2_ref, ga_ref, gn_ref, wc_ref, out_ref, xcat_ref):
    d = ga_ref.shape[0]
    cdt = ga_ref.dtype  # matmul operand dtype (bf16 by default)

    # ---- stage 1: general transforms (MXU, f32 accumulation) ----
    adj = jnp.dot(w1_ref[...].astype(cdt), ga_ref[...],
                  preferred_element_type=jnp.float32)
    noun = jnp.dot(w2_ref[...].astype(cdt), gn_ref[...],
                   preferred_element_type=jnp.float32)

    if NON_LINEARITY:
        adj = jnp.maximum(adj, 0.0)
        noun = jnp.maximum(noun, 0.0)

    if NORMALIZE_EMBEDDINGS:
        adj = _l2_normalize(adj)
        noun = _l2_normalize(noun)

    # ---- stage 2: fused full-additive composition ----
    # [c1 | c2] = [adj | noun] @ [[A1, A2], [N1, N2]]
    xcat_ref[:, 0:d] = adj.astype(xcat_ref.dtype)
    xcat_ref[:, d:2 * d] = noun.astype(xcat_ref.dtype)
    c12 = jnp.dot(xcat_ref[...], wc_ref[...],
                  preferred_element_type=jnp.float32)
    c1 = c12[:, 0:d]
    c2 = c12[:, d:2 * d]
    final = c1 + c2

    if NORMALIZE_EMBEDDINGS:
        c1 = _l2_normalize(c1)
        c2 = _l2_normalize(c2)
        final = _l2_normalize(final)

    # Single lane-dense output slab: [final | c1 | c2], 128-aligned slices.
    out_ref[:, 0:d] = final.astype(out_ref.dtype)
    out_ref[:, d:2 * d] = c1.astype(out_ref.dtype)
    out_ref[:, 2 * d:3 * d] = c2.astype(out_ref.dtype)


def full_additive_joint_ranker(w1, w2, params, *, block_m=128):
    """w1, w2: (B, D) float32.  params: dict of six (D, D) float32 matrices."""
    B, D = w1.shape
    assert w2.shape == (B, D)

    # Pack composition weights once:  [adj|noun] @ [[A1,A2],[N1,N2]] = [c1|c2].
    wc = jnp.block([[params["adj_1"], params["adj_2"]],
                    [params["noun_1"], params["noun_2"]]]).astype(WEIGHT_DTYPE)
    ga = params["general_adj"].astype(WEIGHT_DTYPE)
    gn = params["general_noun"].astype(WEIGHT_DTYPE)

    # Batch tile: multiple of 8 (sublane), capped at block_m (128 is native on
    # v5e; still fine on v6e/v7x).  Pad B so every tile is full.
    tm = min(block_m, max(8, -(-B // 8) * 8))
    n_tiles = pl.cdiv(B, tm)
    Bp = n_tiles * tm
    if Bp != B:
        pad = ((0, Bp - B), (0, 0))
        w1 = jnp.pad(w1, pad)
        w2 = jnp.pad(w2, pad)

    vec_spec = pl.BlockSpec((tm, D), lambda i: (i, 0))
    # Grid-invariant weight blocks: DMA'd once, VMEM-resident for all tiles.
    g_spec = pl.BlockSpec((D, D), lambda i: (0, 0))
    wc_spec = pl.BlockSpec((2 * D, 2 * D), lambda i: (0, 0))
    out_spec = pl.BlockSpec((tm, 3 * D), lambda i: (i, 0))

    out = pl.pallas_call(
        _ranker_kernel,
        out_shape=jax.ShapeDtypeStruct((Bp, 3 * D), jnp.float32),
        grid_spec=pltpu.PrefetchScalarGridSpec(
            num_scalar_prefetch=0,
            grid=(n_tiles,),
            in_specs=[vec_spec, vec_spec, g_spec, g_spec, wc_spec],
            out_specs=out_spec,
            scratch_shapes=[pltpu.VMEM((tm, 2 * D), WEIGHT_DTYPE)],
        ),
        compiler_params=pltpu.CompilerParams(
            dimension_semantics=("parallel",),     # megacore-shard batch tiles
            vmem_limit_bytes=32 * 1024 * 1024,     # explicit scoped-VMEM budget
        ),
    )(w1, w2, ga, gn, wc)

    final = out[:B, 0:D]
    c1 = out[:B, D:2 * D]
    c2 = out[:B, 2 * D:3 * D]
    return final, c1, c2


# ----------------------------- pure-JAX reference ---------------------------

def _l2_normalize_ref(x):
    norm = jnp.sqrt(jnp.sum(x * x, axis=1, keepdims=True))
    return x / jnp.maximum(norm, _EPS)


def _reference(w1, w2, params):
    adj = w1 @ params["general_adj"]
    noun = w2 @ params["general_noun"]
    if NON_LINEARITY:
        adj = jnp.maximum(adj, 0.0)
        noun = jnp.maximum(noun, 0.0)
    if NORMALIZE_EMBEDDINGS:
        adj = _l2_normalize_ref(adj)
        noun = _l2_normalize_ref(noun)
    c1 = adj @ params["adj_1"] + noun @ params["noun_1"]
    c2 = adj @ params["adj_2"] + noun @ params["noun_2"]
    final = c1 + c2
    if NORMALIZE_EMBEDDINGS:
        c1, c2, final = (_l2_normalize_ref(c1), _l2_normalize_ref(c2),
                         _l2_normalize_ref(final))
    return final, c1, c2


if __name__ == "__main__":
    B, D = 256, 128  # batch of phrase pairs, embedding dim

    key = jax.random.PRNGKey(0)
    k1, k2, kp = jax.random.split(key, 3)
    w1 = jax.random.normal(k1, (B, D), dtype=jnp.float32)
    w2 = jax.random.normal(k2, (B, D), dtype=jnp.float32)

    # Parameters per __init__ (torch.eye(input_dim)) plus a small deterministic
    # perturbation so the matmuls are non-trivial.
    eye = jnp.eye(D, dtype=jnp.float32)
    perturb = 0.01 * jax.random.normal(kp, (6, D, D), dtype=jnp.float32)
    params = {
        "general_adj":  eye + perturb[0],
        "general_noun": eye + perturb[1],
        "adj_1":        eye + perturb[2],
        "noun_1":       eye + perturb[3],
        "adj_2":        eye + perturb[4],
        "noun_2":       eye + perturb[5],
    }

    final, c1, c2 = full_additive_joint_ranker(w1, w2, params)
    jax.block_until_ready((final, c1, c2))

    ref_final, ref_c1, ref_c2 = _reference(w1, w2, params)
    # bf16 weight storage => relax tolerance; f32 weights would pass at 1e-5.
    tol = 2e-2 if WEIGHT_DTYPE == jnp.bfloat16 else 1e-5
    np.testing.assert_allclose(np.asarray(final), np.asarray(ref_final), rtol=tol, atol=tol)
    np.testing.assert_allclose(np.asarray(c1), np.asarray(ref_c1), rtol=tol, atol=tol)
    np.testing.assert_allclose(np.asarray(c2), np.asarray(ref_c2), rtol=tol, atol=tol)

    print("KERNEL_OK")
</pallas_src>

<mosaic_0001>
module attributes {stable_mosaic.version = 11 : i64} {
  func.func @_ranker_kernel(%arg0: i32, %arg1: memref<128x128xf32, #tpu.memory_space<vmem>>, %arg2: memref<128x128xf32, #tpu.memory_space<vmem>>, %arg3: memref<128x128xbf16, #tpu.memory_space<vmem>>, %arg4: memref<128x128xbf16, #tpu.memory_space<vmem>>, %arg5: memref<256x256xbf16, #tpu.memory_space<vmem>>, %arg6: memref<128x384xf32, #tpu.memory_space<vmem>>, %arg7: memref<128x256xbf16, #tpu.memory_space<vmem>>) attributes {dimension_semantics = [#tpu.dimension_semantics<parallel>], iteration_bounds = array<i64: 2>, scalar_prefetch = 0 : i64, scratch_operands = 1 : i64, tpu.core_type = #tpu.core_type<tc>, window_params = [{transform_indices = @transform_0, window_bounds = array<i64: 128, 128>}, {transform_indices = @transform_1, window_bounds = array<i64: 128, 128>}, {pipeline_mode = #tpu.pipeline_mode<synchronous>, transform_indices = @transform_2, window_bounds = array<i64: 128, 128>}, {pipeline_mode = #tpu.pipeline_mode<synchronous>, transform_indices = @transform_3, window_bounds = array<i64: 128, 128>}, {pipeline_mode = #tpu.pipeline_mode<synchronous>, transform_indices = @transform_4, window_bounds = array<i64: 256, 256>}, {transform_indices = @transform_5, window_bounds = array<i64: 128, 384>}]} {
    %c0 = arith.constant 0 : index
    %c0_0 = arith.constant 0 : index
    %0 = vector.load %arg1[%c0, %c0_0] : memref<128x128xf32, #tpu.memory_space<vmem>>, vector<128x128xf32>
    %1 = arith.truncf %0 : vector<128x128xf32> to vector<128x128xbf16>
    %c0_1 = arith.constant 0 : index
    %c0_2 = arith.constant 0 : index
    %2 = vector.load %arg3[%c0_1, %c0_2] : memref<128x128xbf16, #tpu.memory_space<vmem>>, vector<128x128xbf16>
    %cst = arith.constant dense<0.000000e+00> : vector<128x128xf32>
    %3 = tpu.matmul %1, %2, %cst {dimension_numbers = #tpu.dot_dimension_numbers<[1], [0], [0], [1], [0, 0, 1, 1], [], []>} : vector<128x128xbf16>, vector<128x128xbf16>, vector<128x128xf32> -> vector<128x128xf32>
    %c0_3 = arith.constant 0 : index
    %c0_4 = arith.constant 0 : index
    %4 = vector.load %arg2[%c0_3, %c0_4] : memref<128x128xf32, #tpu.memory_space<vmem>>, vector<128x128xf32>
    %5 = arith.truncf %4 : vector<128x128xf32> to vector<128x128xbf16>
    %c0_5 = arith.constant 0 : index
    %c0_6 = arith.constant 0 : index
    %6 = vector.load %arg4[%c0_5, %c0_6] : memref<128x128xbf16, #tpu.memory_space<vmem>>, vector<128x128xbf16>
    %cst_7 = arith.constant dense<0.000000e+00> : vector<128x128xf32>
    %7 = tpu.matmul %5, %6, %cst_7 {dimension_numbers = #tpu.dot_dimension_numbers<[1], [0], [0], [1], [0, 0, 1, 1], [], []>} : vector<128x128xbf16>, vector<128x128xbf16>, vector<128x128xf32> -> vector<128x128xf32>
    %cst_8 = arith.constant 0.000000e+00 : f32
    %8 = vector.broadcast %cst_8 : f32 to vector<128x128xf32>
    %9 = arith.maximumf %3, %8 : vector<128x128xf32>
    %cst_9 = arith.constant 0.000000e+00 : f32
    %10 = vector.broadcast %cst_9 : f32 to vector<128x128xf32>
    %11 = arith.maximumf %7, %10 : vector<128x128xf32>
    %12 = arith.mulf %9, %9 : vector<128x128xf32>
    %cst_10 = arith.constant dense<0.000000e+00> : vector<128xf32>
    %13 = vector.multi_reduction <add>, %12, %cst_10 [1] : vector<128x128xf32> to vector<128xf32>
    %14 = vector.shape_cast %13 : vector<128xf32> to vector<128x1xf32>
    %cst_11 = arith.constant 1.000000e-24 : f32
    %15 = vector.broadcast %cst_11 : f32 to vector<128x1xf32>
    %16 = arith.maximumf %14, %15 : vector<128x1xf32>
    %17 = math.rsqrt %16 : vector<128x1xf32>
    %18 = vector.broadcast %17 : vector<128x1xf32> to vector<128x128xf32>
    %19 = arith.mulf %9, %18 : vector<128x128xf32>
    %20 = arith.mulf %11, %11 : vector<128x128xf32>
    %cst_12 = arith.constant dense<0.000000e+00> : vector<128xf32>
    %21 = vector.multi_reduction <add>, %20, %cst_12 [1] : vector<128x128xf32> to vector<128xf32>
    %22 = vector.shape_cast %21 : vector<128xf32> to vector<128x1xf32>
    %cst_13 = arith.constant 1.000000e-24 : f32
    %23 = vector.broadcast %cst_13 : f32 to vector<128x1xf32>
    %24 = arith.maximumf %22, %23 : vector<128x1xf32>
    %25 = math.rsqrt %24 : vector<128x1xf32>
    %26 = vector.broadcast %25 : vector<128x1xf32> to vector<128x128xf32>
    %27 = arith.mulf %11, %26 : vector<128x128xf32>
    %28 = arith.truncf %19 : vector<128x128xf32> to vector<128x128xbf16>
    %c0_14 = arith.constant 0 : index
    %c0_15 = arith.constant 0 : index
    %29 = vector.load %arg7[%c0_14, %c0_15] : memref<128x256xbf16, #tpu.memory_space<vmem>>, vector<128x128xbf16>
    tpu.vector_store %arg7[%c0_14, %c0_15], %28 {strides = array<i32>} : memref<128x256xbf16, #tpu.memory_space<vmem>>, vector<128x128xbf16>,
    %30 = arith.truncf %27 : vector<128x128xf32> to vector<128x128xbf16>
    %c0_16 = arith.constant 0 : index
    %c128 = arith.constant 128 : index
    %31 = vector.load %arg7[%c0_16, %c128] : memref<128x256xbf16, #tpu.memory_space<vmem>>, vector<128x128xbf16>
    tpu.vector_store %arg7[%c0_16, %c128], %30 {strides = array<i32>} : memref<128x256xbf16, #tpu.memory_space<vmem>>, vector<128x128xbf16>,
    %c0_17 = arith.constant 0 : index
    %c0_18 = arith.constant 0 : index
    %32 = vector.load %arg7[%c0_17, %c0_18] : memref<128x256xbf16, #tpu.memory_space<vmem>>, vector<128x256xbf16>
    %c0_19 = arith.constant 0 : index
    %c0_20 = arith.constant 0 : index
    %33 = vector.load %arg5[%c0_19, %c0_20] : memref<256x256xbf16, #tpu.memory_space<vmem>>, vector<256x256xbf16>
    %cst_21 = arith.constant dense<0.000000e+00> : vector<128x256xf32>
    %34 = tpu.matmul %32, %33, %cst_21 {dimension_numbers = #tpu.dot_dimension_numbers<[1], [0], [0], [1], [0, 0, 1, 1], [], []>} : vector<128x256xbf16>, vector<256x256xbf16>, vector<128x256xf32> -> vector<128x256xf32>
    %35 = vector.extract_strided_slice %34 {offsets = [0, 0], sizes = [128, 128], strides = [1, 1]} : vector<128x256xf32> to vector<128x128xf32>
    %36 = vector.extract_strided_slice %34 {offsets = [0, 128], sizes = [128, 128], strides = [1, 1]} : vector<128x256xf32> to vector<128x128xf32>
    %37 = arith.addf %35, %36 : vector<128x128xf32>
    %38 = arith.mulf %35, %35 : vector<128x128xf32>
    %cst_22 = arith.constant dense<0.000000e+00> : vector<128xf32>
    %39 = vector.multi_reduction <add>, %38, %cst_22 [1] : vector<128x128xf32> to vector<128xf32>
    %40 = vector.shape_cast %39 : vector<128xf32> to vector<128x1xf32>
    %cst_23 = arith.constant 1.000000e-24 : f32
    %41 = vector.broadcast %cst_23 : f32 to vector<128x1xf32>
    %42 = arith.maximumf %40, %41 : vector<128x1xf32>
    %43 = math.rsqrt %42 : vector<128x1xf32>
    %44 = vector.broadcast %43 : vector<128x1xf32> to vector<128x128xf32>
    %45 = arith.mulf %35, %44 : vector<128x128xf32>
    %46 = arith.mulf %36, %36 : vector<128x128xf32>
    %cst_24 = arith.constant dense<0.000000e+00> : vector<128xf32>
    %47 = vector.multi_reduction <add>, %46, %cst_24 [1] : vector<128x128xf32> to vector<128xf32>
    %48 = vector.shape_cast %47 : vector<128xf32> to vector<128x1xf32>
    %cst_25 = arith.constant 1.000000e-24 : f32
    %49 = vector.broadcast %cst_25 : f32 to vector<128x1xf32>
    %50 = arith.maximumf %48, %49 : vector<128x1xf32>
    %51 = math.rsqrt %50 : vector<128x1xf32>
    %52 = vector.broadcast %51 : vector<128x1xf32> to vector<128x128xf32>
    %53 = arith.mulf %36, %52 : vector<128x128xf32>
    %54 = arith.mulf %37, %37 : vector<128x128xf32>
    %cst_26 = arith.constant dense<0.000000e+00> : vector<128xf32>
    %55 = vector.multi_reduction <add>, %54, %cst_26 [1] : vector<128x128xf32> to vector<128xf32>
    %56 = vector.shape_cast %55 : vector<128xf32> to vector<128x1xf32>
    %cst_27 = arith.constant 1.000000e-24 : f32
    %57 = vector.broadcast %cst_27 : f32 to vector<128x1xf32>
    %58 = arith.maximumf %56, %57 : vector<128x1xf32>
    %59 = math.rsqrt %58 : vector<128x1xf32>
    %60 = vector.broadcast %59 : vector<128x1xf32> to vector<128x128xf32>
    %61 = arith.mulf %37, %60 : vector<128x128xf32>
    %c0_28 = arith.constant 0 : index
    %c0_29 = arith.constant 0 : index
    %62 = vector.load %arg6[%c0_28, %c0_29] : memref<128x384xf32, #tpu.memory_space<vmem>>, vector<128x128xf32>
    tpu.vector_store %arg6[%c0_28, %c0_29], %61 {strides = array<i32>} : memref<128x384xf32, #tpu.memory_space<vmem>>, vector<128x128xf32>,
    %c0_30 = arith.constant 0 : index
    %c128_31 = arith.constant 128 : index
    %63 = vector.load %arg6[%c0_30, %c128_31] : memref<128x384xf32, #tpu.memory_space<vmem>>, vector<128x128xf32>
    tpu.vector_store %arg6[%c0_30, %c128_31], %45 {strides = array<i32>} : memref<128x384xf32, #tpu.memory_space<vmem>>, vector<128x128xf32>,
    %c0_32 = arith.constant 0 : index
    %c256 = arith.constant 256 : index
    %64 = vector.load %arg6[%c0_32, %c256] : memref<128x384xf32, #tpu.memory_space<vmem>>, vector<128x128xf32>
    tpu.vector_store %arg6[%c0_32, %c256], %53 {strides = array<i32>} : memref<128x384xf32, #tpu.memory_space<vmem>>, vector<128x128xf32>,
    return
  }
  func.func @transform_0(%arg0: i32) -> (i32, i32) {
    %c0_i32 = arith.constant 0 : i32
    %c0_i32_0 = arith.constant 0 : i32
    return %arg0, %c0_i32 : i32, i32
  }
  func.func @transform_1(%arg0: i32) -> (i32, i32) {
    %c0_i32 = arith.constant 0 : i32
    %c0_i32_0 = arith.constant 0 : i32
    return %arg0, %c0_i32 : i32, i32
  }
  func.func @transform_2(%arg0: i32) -> (i32, i32) {
    %c0_i32 = arith.constant 0 : i32
    %c0_i32_0 = arith.constant 0 : i32
    %c0_i32_1 = arith.constant 0 : i32
    return %c0_i32, %c0_i32_0 : i32, i32
  }
  func.func @transform_3(%arg0: i32) -> (i32, i32) {
    %c0_i32 = arith.constant 0 : i32
    %c0_i32_0 = arith.constant 0 : i32
    %c0_i32_1 = arith.constant 0 : i32
    return %c0_i32, %c0_i32_0 : i32, i32
  }
  func.func @transform_4(%arg0: i32) -> (i32, i32) {
    %c0_i32 = arith.constant 0 : i32
    %c0_i32_0 = arith.constant 0 : i32
    %c0_i32_1 = arith.constant 0 : i32
    return %c0_i32, %c0_i32_0 : i32, i32
  }
  func.func @transform_5(%arg0: i32) -> (i32, i32) {
    %c0_i32 = arith.constant 0 : i32
    %c0_i32_0 = arith.constant 0 : i32
    return %arg0, %c0_i32 : i32, i32
  }
}

</mosaic_0001>

<llo_original>
// kernel: tpu_custom_call.1
$region0: #{tpu_custom_call.1}
  #allocation0 [shape = 'u32[]', space=smem, size = 0x4, offset = 0x4, fixed_abs, tag = 'smem constant byte address 0x4 - core index']
  #allocation1 [shape = 'u32[144,128]{1,0:T(1,128)}', space=vmem, size = 0x12000, scoped, tag = 'internal scratch']
  #allocation2 [shape = 'bf16[128,256]{1,0:T(16,128)(2,1)}', space=vmem, size = 0x10000, scoped, tag = 'scratch operand']
  %s0 = inlined_call_operand.hbm [shape: f32[256,128], index: 0, kind: input, shape index: {}]
  %s1 = inlined_call_operand.hbm [shape: f32[256,128], index: 1, kind: input, shape index: {}]
  %s2 = inlined_call_operand.hbm [shape: bf16[128,128], index: 2, kind: input, shape index: {}]
  %s3 = inlined_call_operand.hbm [shape: bf16[128,128], index: 3, kind: input, shape index: {}]
  %s4 = inlined_call_operand.hbm [shape: bf16[256,256], index: 4, kind: input, shape index: {}]
  %s5 = inlined_call_operand.hbm [shape: f32[256,384], index: 5, kind: output, shape index: {}]
  %s6 = sld [smem:[#allocation0]]
  $region73: #{tpu_custom_call.1} parent=0
    _
  %s8 = ssub.s32 1, %s6
  %s9 = scalar_select 0, %s8, %s6
  $region1: #{tpu_custom_call.1} parent=0
    #allocation3 [shape = 'u8[131072]{0}', space=vmem, size = 0x20000, scoped, tag = 'input window, operand 0']
    #allocation4 [shape = 's32[2]{0}', space=sflag, size = 0x8, scoped, tag = 'scoped memory for tpu_custom_call.1']
    #allocation5 [shape = 's32[2]{0}', space=sflag, size = 0x8, scoped, tag = 'scoped memory for tpu_custom_call.1']
    #allocation6 [shape = 'u8[131072]{0}', space=vmem, size = 0x20000, scoped, tag = 'input window, operand 1']
    #allocation7 [shape = 's32[2]{0}', space=sflag, size = 0x8, scoped, tag = 'scoped memory for tpu_custom_call.1']
    #allocation8 [shape = 'u8[32768]{0}', space=vmem, size = 0x8000, scoped, tag = 'input window, operand 2, single buffered']
    #allocation9 [shape = 'u8[32768]{0}', space=vmem, size = 0x8000, scoped, tag = 'input window, operand 3, single buffered']
    #allocation10 [shape = 's32[1]{0}', space=sflag, size = 0x4, scoped, tag = 'scoped memory for tpu_custom_call.1']
    #allocation11 [shape = 'u8[131072]{0}', space=vmem, size = 0x20000, scoped, tag = 'input window, operand 4, single buffered']
    #allocation12 [shape = 'u8[393216]{0}', space=vmem, size = 0x60000, scoped, tag = 'output window, operand 0']
    %10 = vsyncpa [#allocation4], 0
    %s11 = scalar_lea.sflag [#allocation4], 1
    %12 = vsyncpa %s11, 0
    %13 = vsyncpa [#allocation7], 0
    %s14 = scalar_lea.sflag [#allocation7], 1
    %15 = vsyncpa %s14, 0
    %16 = vsyncpa [#allocation10], 0
    %17 = vsyncpa [#allocation5], 0
    %s18 = scalar_lea.sflag [#allocation5], 1
    %19 = vsyncpa %s18, 0
    loop: start=0, step=1, limit=4
    $region2: #{tpu_custom_call.1} parent=1 // loop_pre_header
      _
    $region3: #{tpu_custom_call.1} parent=1 // loop_header
      %s21 = sphi 0, %s25
      %p22 = scmp.ge.s32.totalorder %s21, 4
      %s31 = sphi 0, %s33
      %s34 = sphi 0, %s31
      %s35 = sphi 0, %s34
      %s51 = sphi 0, %s35
      %s57 = sphi 0, %s59
      %s60 = sphi 0, %s57
      %s61 = sphi 0, %s60
      %s77 = sphi 0, %s61
      %s81 = sphi 0, %s81
      %s83 = sphi 0, %s81
      %s84 = sphi 0, %s83
      %s98 = sphi 0, %s84
      %s102 = sphi 0, %s102
      %s104 = sphi 0, %s102
      %s105 = sphi 0, %s104
      %s119 = sphi 0, %s105
      %s123 = sphi 0, %s123
      %s125 = sphi 0, %s123
      %s126 = sphi 0, %s125
      %s140 = sphi 0, %s126
      %s146 = sphi 0, %s148
      %s149 = sphi 0, %s146
      %s150 = sphi 0, %s149
      %s166 = sphi 0, %s150
    $region4: #{tpu_custom_call.1} parent=1 // loop_header_branch
      %24 = sbr.rel (%p22) target = $region8
    $region5: #{tpu_custom_call.1} parent=1 // loop_body
      %s26 = ssub.s32 %s21, 1
      %s27 = ssub.s32 %s21, 2
      %s28 = sadd.s32 %s21, 1
      %s29 = ssub.s32 %s21, %s28
      %p30 = scmp.eq.s32.totalorder %s29, 0
      %s32 = sadd.s32 %s31, 1
      %s33 = scalar_select %p30, %s31, %s32
      %p36 = pneg %p30
      %p37 = scmp.eq.s32.totalorder %s21, 1
      %p38 = por %p36, %p37
      %p39 = scmp.ne.s32.totalorder %s31, %s34
      %p40 = scmp.eq.s32.totalorder %s21, 0
      %p41 = por %p39, %p40
      %p42 = scmp.ne.s32.totalorder %s31, %s34
      %p43 = scmp.eq.s32.totalorder %s26, 1
      %p44 = por %p42, %p43
      %p45 = scmp.ne.s32.totalorder %s34, %s35
      %p46 = scmp.eq.s32.totalorder %s26, 0
      %p47 = por %p45, %p46
      %p48 = scmp.ne.s32.totalorder %s34, %s35
      %p49 = scmp.eq.s32.totalorder %s27, 1
      %p50 = por %p48, %p49
      %p52 = scmp.ne.s32.totalorder %s35, %s51
      %p53 = scmp.eq.s32.totalorder %s27, 0
      %p54 = por %p52, %p53
      %s55 = ssub.s32 %s21, %s28
      %p56 = scmp.eq.s32.totalorder %s55, 0
      %s58 = sadd.s32 %s57, 1
      %s59 = scalar_select %p56, %s57, %s58
      %p62 = pneg %p56
      %p63 = scmp.eq.s32.totalorder %s21, 1
      %p64 = por %p62, %p63
      %p65 = scmp.ne.s32.totalorder %s57, %s60
      %p66 = scmp.eq.s32.totalorder %s21, 0
      %p67 = por %p65, %p66
      %p68 = scmp.ne.s32.totalorder %s57, %s60
      %p69 = scmp.eq.s32.totalorder %s26, 1
      %p70 = por %p68, %p69
      %p71 = scmp.ne.s32.totalorder %s60, %s61
      %p72 = scmp.eq.s32.totalorder %s26, 0
      %p73 = por %p71, %p72
      %p74 = scmp.ne.s32.totalorder %s60, %s61
      %p75 = scmp.eq.s32.totalorder %s27, 1
      %p76 = por %p74, %p75
      %p78 = scmp.ne.s32.totalorder %s61, %s77
      %p79 = scmp.eq.s32.totalorder %s27, 0
      %p80 = por %p78, %p79
      %s82 = sadd.s32 %s81, 1
      %p85 = scmp.eq.s32.totalorder %s21, 1
      %p86 = scmp.ne.s32.totalorder %s81, %s83
      %p87 = scmp.eq.s32.totalorder %s21, 0
      %p88 = por %p86, %p87
      %p89 = scmp.ne.s32.totalorder %s81, %s83
      %p90 = scmp.eq.s32.totalorder %s26, 1
      %p91 = por %p89, %p90
      %p92 = scmp.ne.s32.totalorder %s83, %s84
      %p93 = scmp.eq.s32.totalorder %s26, 0
      %p94 = por %p92, %p93
      %p95 = scmp.ne.s32.totalorder %s83, %s84
      %p96 = scmp.eq.s32.totalorder %s27, 1
      %p97 = por %p95, %p96
      %p99 = scmp.ne.s32.totalorder %s84, %s98
      %p100 = scmp.eq.s32.totalorder %s27, 0
      %p101 = por %p99, %p100
      %s103 = sadd.s32 %s102, 1
      %p106 = scmp.eq.s32.totalorder %s21, 1
      %p107 = scmp.ne.s32.totalorder %s102, %s104
      %p108 = scmp.eq.s32.totalorder %s21, 0
      %p109 = por %p107, %p108
      %p110 = scmp.ne.s32.totalorder %s102, %s104
      %p111 = scmp.eq.s32.totalorder %s26, 1
      %p112 = por %p110, %p111
      %p113 = scmp.ne.s32.totalorder %s104, %s105
      %p114 = scmp.eq.s32.totalorder %s26, 0
      %p115 = por %p113, %p114
      %p116 = scmp.ne.s32.totalorder %s104, %s105
      %p117 = scmp.eq.s32.totalorder %s27, 1
      %p118 = por %p116, %p117
      %p120 = scmp.ne.s32.totalorder %s105, %s119
      %p121 = scmp.eq.s32.totalorder %s27, 0
      %p122 = por %p120, %p121
      %s124 = sadd.s32 %s123, 1
      %p127 = scmp.eq.s32.totalorder %s21, 1
      %p128 = scmp.ne.s32.totalorder %s123, %s125
      %p129 = scmp.eq.s32.totalorder %s21, 0
      %p130 = por %p128, %p129
      %p131 = scmp.ne.s32.totalorder %s123, %s125
      %p132 = scmp.eq.s32.totalorder %s26, 1
      %p133 = por %p131, %p132
      %p134 = scmp.ne.s32.totalorder %s125, %s126
      %p135 = scmp.eq.s32.totalorder %s26, 0
      %p136 = por %p134, %p135
      %p137 = scmp.ne.s32.totalorder %s125, %s126
      %p138 = scmp.eq.s32.totalorder %s27, 1
      %p139 = por %p137, %p138
      %p141 = scmp.ne.s32.totalorder %s126, %s140
      %p142 = scmp.eq.s32.totalorder %s27, 0
      %p143 = por %p141, %p142
      %s144 = ssub.s32 %s21, %s28
      %p145 = scmp.eq.s32.totalorder %s144, 0
      %s147 = sadd.s32 %s146, 1
      %s148 = scalar_select %p145, %s146, %s147
      %p151 = pneg %p145
      %p152 = scmp.eq.s32.totalorder %s21, 1
      %p153 = por %p151, %p152
      %p154 = scmp.ne.s32.totalorder %s146, %s149
      %p155 = scmp.eq.s32.totalorder %s21, 0
      %p156 = por %p154, %p155
      %p157 = scmp.ne.s32.totalorder %s146, %s149
      %p158 = scmp.eq.s32.totalorder %s26, 1
      %p159 = por %p157, %p158
      %p160 = scmp.ne.s32.totalorder %s149, %s150
      %p161 = scmp.eq.s32.totalorder %s26, 0
      %p162 = por %p160, %p161
      %p163 = scmp.ne.s32.totalorder %s149, %s150
      %p164 = scmp.eq.s32.totalorder %s27, 1
      %p165 = por %p163, %p164
      %p167 = scmp.ne.s32.totalorder %s150, %s166
      %p168 = scmp.eq.s32.totalorder %s27, 0
      %p169 = por %p167, %p168
      %p170 = scmp.le.s32.totalorder 1, %s21
      %p171 = scmp.lt.s32.totalorder %s21, 3
      %p172 = pnand %p170, %p171
      %p173 = pneg %p172
      // Predicated region
      $region9: #{tpu_custom_call.1} parent=5 // pred_check
        _
      $region10: #{tpu_custom_call.1} parent=5 // pred_check_branch
        %175 = sbr.rel (%p172) target = $region12
      $region11: #{tpu_custom_call.1} parent=5 // pred_region
        %s176 = ssub.s32 %s21, 1
        // Predicated region
        $region13: #{tpu_custom_call.1} parent=11 // pred_check
          %p177 = pneg %p94
        $region14: #{tpu_custom_call.1} parent=11 // pred_check_branch
          %179 = sbr.rel (%p177) target = $region16
        $region15: #{tpu_custom_call.1} parent=11 // pred_region
          %s181 = ssub.s32 1024, 1024
          %182 = vsyncadd [#allocation7], %s181
          %s183 = sshll.u32 [#allocation8], 4
          %s184 = int_to_ptr.vmem [resolvable:$true] %s183
          %189 = dma.hbm_to_vmem [thread:$0]  %s2, 1024, %s184, [#allocation7], 64, 64, 4
        $region16: #{tpu_custom_call.1} parent=11 // pred_fallthru
          _
        // Predicated region
        $region17: #{tpu_custom_call.1} parent=11 // pred_check
          %p190 = pneg %p115
        $region18: #{tpu_custom_call.1} parent=11 // pred_check_branch
          %192 = sbr.rel (%p190) target = $region20
        $region19: #{tpu_custom_call.1} parent=11 // pred_region
          %s194 = ssub.s32 1024, 1024
          %195 = vsyncadd [#allocation10], %s194
          %s196 = sshll.u32 [#allocation9], 4
          %s197 = int_to_ptr.vmem [resolvable:$true] %s196
          %202 = dma.hbm_to_vmem [thread:$0]  %s3, 1024, %s197, [#allocation10], 64, 64, 4
        $region20: #{tpu_custom_call.1} parent=11 // pred_fallthru
          _
        // Predicated region
        $region21: #{tpu_custom_call.1} parent=11 // pred_check
          %p203 = pneg %p136
        $region22: #{tpu_custom_call.1} parent=11 // pred_check_branch
          %205 = sbr.rel (%p203) target = $region24
        $region23: #{tpu_custom_call.1} parent=11 // pred_region
          %s207 = ssub.s32 4096, 4096
          %208 = vsyncadd [#allocation10], %s207
          %s209 = sshll.u32 [#allocation11], 4
          %s210 = int_to_ptr.vmem [resolvable:$true] %s209
          %215 = dma.hbm_to_vmem [thread:$0]  %s4, 4096, %s210, [#allocation10], 128, 128, 8
        $region24: #{tpu_custom_call.1} parent=11 // pred_fallthru
          _
      $region12: #{tpu_custom_call.1} parent=5 // pred_fallthru
        _
      %p216 = scmp.lt.s32.totalorder %s21, 2
      // Predicated region
      $region25: #{tpu_custom_call.1} parent=5 // pred_check
        %p217 = pneg %p216
      $region26: #{tpu_custom_call.1} parent=5 // pred_check_branch
        %219 = sbr.rel (%p217) target = $region28
      $region27: #{tpu_custom_call.1} parent=5 // pred_region
        // Predicated region
        $region29: #{tpu_custom_call.1} parent=27 // pred_check
          %p220 = pneg %p41
        $region30: #{tpu_custom_call.1} parent=27 // pred_check_branch
          %222 = sbr.rel (%p220) target = $region32
        $region31: #{tpu_custom_call.1} parent=27 // pred_region
          %s223 = sand.u32 %s31, 1
          %s224 = scalar_lea.sflag [#allocation4], %s223
          %s225 = sand.u32 %s31, 1
          %s226 = smul.addr %s225, 128
          %s227 = scalar_lea.vmem [#allocation3], %s226
          %s228 = smul.u32 16, %s21
          %s230 = ssub.s32 2048, 2048
          %231 = vsyncadd %s224, %s230
          %s232 = smul.addr %s228, 128
          %s233 = scalar_lea.hbm %s0, %s232
          %s234 = sshll.u32 %s227, 4
          %s235 = int_to_ptr.vmem [resolvable:$true] %s234
          %240 = dma.hbm_to_vmem [thread:$0]  %s233, 2048, %s235, %s224, 128, 128, 8
        $region32: #{tpu_custom_call.1} parent=27 // pred_fallthru
          _
        // Predicated region
        $region33: #{tpu_custom_call.1} parent=27 // pred_check
          %p241 = pneg %p67
        $region34: #{tpu_custom_call.1} parent=27 // pred_check_branch
          %243 = sbr.rel (%p241) target = $region36
        $region35: #{tpu_custom_call.1} parent=27 // pred_region
          %s244 = sand.u32 %s21, 1
          %s245 = scalar_lea.sflag [#allocation7], %s244
          %s246 = sand.u32 %s57, 1
          %s247 = smul.addr %s246, 128
          %s248 = scalar_lea.vmem [#allocation6], %s247
          %s249 = smul.u32 16, %s21
          %s251 = ssub.s32 2048, 2048
          %252 = vsyncadd %s245, %s251
          %s253 = smul.addr %s249, 128
          %s254 = scalar_lea.hbm %s1, %s253
          %s255 = sshll.u32 %s248, 4
          %s256 = int_to_ptr.vmem [resolvable:$true] %s255
          %261 = dma.hbm_to_vmem [thread:$0]  %s254, 2048, %s256, %s245, 128, 128, 8
        $region36: #{tpu_custom_call.1} parent=27 // pred_fallthru
          _
      $region28: #{tpu_custom_call.1} parent=5 // pred_fallthru
        _
      %p262 = scmp.le.s32.totalorder 1, %s21
      %p263 = scmp.lt.s32.totalorder %s21, 3
      %p264 = pnand %p262, %p263
      %p265 = pneg %p264
      // Predicated region
      $region37: #{tpu_custom_call.1} parent=5 // pred_check
        _
      $region38: #{tpu_custom_call.1} parent=5 // pred_check_branch
        %267 = sbr.rel (%p264) target = $region40
      $region39: #{tpu_custom_call.1} parent=5 // pred_region
        %s268 = ssub.s32 %s21, 1
        %s269 = sand.u32 %s34, 1
        %s270 = scalar_lea.sflag [#allocation4], %s269
        %s271 = sand.u32 %s34, 1
        %s272 = smul.addr %s271, 128
        %s273 = scalar_lea.vmem [#allocation3], %s272
        // Predicated region
        $region41: #{tpu_custom_call.1} parent=39 // pred_check
          %p274 = pneg %p47
        $region42: #{tpu_custom_call.1} parent=39 // pred_check_branch
          %276 = sbr.rel (%p274) target = $region44
        $region43: #{tpu_custom_call.1} parent=39 // pred_region
          %277 = dma.done %s270, 2048
        $region44: #{tpu_custom_call.1} parent=39 // pred_fallthru
          _
        %s278 = sand.u32 %s26, 1
        %s279 = scalar_lea.sflag [#allocation7], %s278
        %s280 = sand.u32 %s60, 1
        %s281 = smul.addr %s280, 128
        %s282 = scalar_lea.vmem [#allocation6], %s281
        // Predicated region
        $region45: #{tpu_custom_call.1} parent=39 // pred_check
          %p283 = pneg %p73
        $region46: #{tpu_custom_call.1} parent=39 // pred_check_branch
          %285 = sbr.rel (%p283) target = $region48
        $region47: #{tpu_custom_call.1} parent=39 // pred_region
          %286 = dma.done %s279, 2048
        $region48: #{tpu_custom_call.1} parent=39 // pred_fallthru
          _
        // Predicated region
        $region49: #{tpu_custom_call.1} parent=39 // pred_check
          %p287 = pneg %p94
        $region50: #{tpu_custom_call.1} parent=39 // pred_check_branch
          %289 = sbr.rel (%p287) target = $region52
        $region51: #{tpu_custom_call.1} parent=39 // pred_region
          %290 = dma.done [#allocation7], 1024
        $region52: #{tpu_custom_call.1} parent=39 // pred_fallthru
          _
        // Predicated region
        $region53: #{tpu_custom_call.1} parent=39 // pred_check
          %p291 = pneg %p115
        $region54: #{tpu_custom_call.1} parent=39 // pred_check_branch
          %293 = sbr.rel (%p291) target = $region56
        $region55: #{tpu_custom_call.1} parent=39 // pred_region
          %294 = dma.done [#allocation10], 1024
        $region56: #{tpu_custom_call.1} parent=39 // pred_fallthru
          _
        // Predicated region
        $region57: #{tpu_custom_call.1} parent=39 // pred_check
          %p295 = pneg %p136
        $region58: #{tpu_custom_call.1} parent=39 // pred_check_branch
          %297 = sbr.rel (%p295) target = $region60
        $region59: #{tpu_custom_call.1} parent=39 // pred_region
          %298 = dma.done [#allocation10], 4096
        $region60: #{tpu_custom_call.1} parent=39 // pred_fallthru
          _
        %s299 = sand.u32 %s34, 1
        %s300 = scalar_lea.sflag [#allocation4], %s299
        %s301 = sand.u32 %s34, 1
        %s302 = smul.addr %s301, 128
        %s303 = scalar_lea.vmem [#allocation3], %s302
        %p304 = pneg %p47
        %p305 = pneg %p44
        %s306 = sand.u32 %s26, 1
        %s307 = scalar_lea.sflag [#allocation7], %s306
        %s308 = sand.u32 %s60, 1
        %s309 = smul.addr %s308, 128
        %s310 = scalar_lea.vmem [#allocation6], %s309
        %p311 = pneg %p73
        %p312 = pneg %p70
        %p313 = pneg %p94
        %p314 = pneg %p91
        %p315 = pneg %p115
        %p316 = pneg %p112
        %p317 = pneg %p136
        %p318 = pneg %p133
        %p319 = pneg %p162
        %p320 = pneg %p159
        %s321 = sand.u32 %s149, 1
        %s322 = scalar_lea.sflag [#allocation5], %s321
        %s323 = sand.u32 %s149, 1
        %s324 = smul.addr %s323, 384
        %s325 = scalar_lea.vmem [#allocation12], %s324
        %s326 = smul.u32 16, %s26
        %s327 = smul.u32 16, %s26
        %s328 = smul.u32 16, %s26
        %v330 = vld [vmem:[%s273] sm:$0xff]
        %v331 = vld [vmem:[%s273 + $0x8] sm:$0xff]
        %v332 = vld [vmem:[%s273 + $0x10] sm:$0xff]
        %v333 = vld [vmem:[%s273 + $0x18] sm:$0xff]
        %v334 = vld [vmem:[%s273 + $0x20] sm:$0xff]
        %v335 = vld [vmem:[%s273 + $0x28] sm:$0xff]
        %v336 = vld [vmem:[%s273 + $0x30] sm:$0xff]
        %v337 = vld [vmem:[%s273 + $0x38] sm:$0xff]
        %v338 = vld [vmem:[%s273 + $0x40] sm:$0xff]
        %v339 = vld [vmem:[%s273 + $0x48] sm:$0xff]
        %v340 = vld [vmem:[%s273 + $0x50] sm:$0xff]
        %v341 = vld [vmem:[%s273 + $0x58] sm:$0xff]
        %v342 = vld [vmem:[%s273 + $0x60] sm:$0xff]
        %v343 = vld [vmem:[%s273 + $0x68] sm:$0xff]
        %v344 = vld [vmem:[%s273 + $0x70] sm:$0xff]
        %v345 = vld [vmem:[%s273 + $0x78] sm:$0xff]
        %v346 = vpack.c.bf16 %v331, %v330
        %v347 = vpack.c.bf16 %v333, %v332
        %v348 = vpack.c.bf16 %v335, %v334
        %v349 = vpack.c.bf16 %v337, %v336
        %v350 = vpack.c.bf16 %v339, %v338
        %v351 = vpack.c.bf16 %v341, %v340
        %v352 = vpack.c.bf16 %v343, %v342
        %v353 = vpack.c.bf16 %v345, %v344
        %v354 = vld [vmem:[#allocation8] sm:$0xf]
        %v355 = vld [vmem:[#allocation8 + $0x4] sm:$0xf]
        %v356 = vld [vmem:[#allocation8 + $0x8] sm:$0xf]
        %v357 = vld [vmem:[#allocation8 + $0xc] sm:$0xf]
        %v358 = vld [vmem:[#allocation8 + $0x10] sm:$0xf]
        %v359 = vld [vmem:[#allocation8 + $0x14] sm:$0xf]
        %v360 = vld [vmem:[#allocation8 + $0x18] sm:$0xf]
        %v361 = vld [vmem:[#allocation8 + $0x1c] sm:$0xf]
        %v362 = vld [vmem:[#allocation8 + $0x20] sm:$0xf]
        %v363 = vld [vmem:[#allocation8 + $0x24] sm:$0xf]
        %v364 = vld [vmem:[#allocation8 + $0x28] sm:$0xf]
        %v365 = vld [vmem:[#allocation8 + $0x2c] sm:$0xf]
        %v366 = vld [vmem:[#allocation8 + $0x30] sm:$0xf]
        %v367 = vld [vmem:[#allocation8 + $0x34] sm:$0xf]
        %v368 = vld [vmem:[#allocation8 + $0x38] sm:$0xf]
        %v369 = vld [vmem:[#allocation8 + $0x3c] sm:$0xf]
        %v386 = vunpack.c.l.b16 %v354
        %v387 = vunpack.c.l.b16 %v355
        %v388 = vunpack.c.l.b16 %v356
        %v389 = vunpack.c.l.b16 %v357
        %v390 = vunpack.c.l.b16 %v358
        %v391 = vunpack.c.l.b16 %v359
        %v392 = vunpack.c.l.b16 %v360
        %v393 = vunpack.c.l.b16 %v361
        %v394 = vunpack.c.l.b16 %v362
        %v395 = vunpack.c.l.b16 %v363
        %v396 = vunpack.c.l.b16 %v364
        %v397 = vunpack.c.l.b16 %v365
        %v398 = vunpack.c.l.b16 %v366
        %v399 = vunpack.c.l.b16 %v367
        %v400 = vunpack.c.l.b16 %v368
        %v401 = vunpack.c.l.b16 %v369
        %v402 = vpack.c.b16 %v387, %v386
        %v403 = vpack.c.b16 %v389, %v388
        %v404 = vpack.c.b16 %v391, %v390
        %v405 = vpack.c.b16 %v393, %v392
        %v406 = vpack.c.b16 %v395, %v394
        %v407 = vpack.c.b16 %v397, %v396
        %v408 = vpack.c.b16 %v399, %v398
        %v409 = vpack.c.b16 %v401, %v400
        %418 = vmatprep.subr.bf16.mxu0 0
        %419 = vmatpush1.bf16.msra.mxu0 %v402
        %420 = vmatprep.subr.bf16.mxu0 0
        %421 = vmatpush1.bf16.msra.mxu0 %v403
        %422 = vmatprep.subr.bf16.mxu0 0
        %423 = vmatpush1.bf16.msra.mxu0 %v404
        %424 = vmatprep.subr.bf16.mxu0 0
        %425 = vmatpush1.bf16.msra.mxu0 %v405
        %426 = vmatprep.subr.bf16.mxu0 0
        %427 = vmatpush1.bf16.msra.mxu0 %v406
        %428 = vmatprep.subr.bf16.mxu0 0
        %429 = vmatpush1.bf16.msra.mxu0 %v407
        %430 = vmatprep.subr.bf16.mxu0 0
        %431 = vmatpush1.bf16.msra.mxu0 %v408
        %432 = vmatprep.subr.bf16.mxu0 0
        %433 = vmatpush1.bf16.msra.mxu0 %v409
        %434 = vmatprep.subr.bf16.mxu0 0
        %435 = vmatpush1.bf16.msra.mxu0 0
        %436 = vmatprep.subr.bf16.mxu0 0
        %437 = vmatpush1.bf16.msra.mxu0 0
        %438 = vmatprep.subr.bf16.mxu0 0
        %439 = vmatpush1.bf16.msra.mxu0 0
        %440 = vmatprep.subr.bf16.mxu0 0
        %441 = vmatpush1.bf16.msra.mxu0 0
        %442 = vmatprep.subr.bf16.mxu0 0
        %443 = vmatpush1.bf16.msra.mxu0 0
        %444 = vmatprep.subr.bf16.mxu0 0
        %445 = vmatpush1.bf16.msra.mxu0 0
        %446 = vmatprep.subr.bf16.mxu0 0
        %447 = vmatpush1.bf16.msra.mxu0 0
        %448 = vmatprep.subr.bf16.mxu0 0
        %449 = vmatpush1.bf16.msra.mxu0 0
        %450 = vmatprep.mubr.bf16.mxu0 0
        %451 = vmatmul.mubr.bf16.gmra.mrb[0].mxu0 %v346
        %v452 = vpop.f32.mrb[0].mxu0
        %v453 = vadd.f32 0.0, %v452
        %v454 = vpop.f32.mrb[0].mxu0
        %v455 = vpop.f32.mrb[0].mxu0
        %v456 = vadd.f32 0.0, %v455
        %v457 = vpop.f32.mrb[0].mxu0
        %458 = vmatprep.mubr.bf16.mxu0 0
        %459 = vmatmul.mubr.bf16.gmra.mrb[0].mxu0 %v347
        %v460 = vpop.f32.mrb[0].mxu0
        %v461 = vadd.f32 0.0, %v460
        %v462 = vpop.f32.mrb[0].mxu0
        %v463 = vpop.f32.mrb[0].mxu0
        %v464 = vadd.f32 0.0, %v463
        %v465 = vpop.f32.mrb[0].mxu0
        %466 = vmatprep.mubr.bf16.mxu0 0
        %467 = vmatmul.mubr.bf16.gmra.mrb[0].mxu0 %v348
        %v468 = vpop.f32.mrb[0].mxu0
        %v469 = vadd.f32 0.0, %v468
        %v470 = vpop.f32.mrb[0].mxu0
        %v471 = vpop.f32.mrb[0].mxu0
        %v472 = vadd.f32 0.0, %v471
        %v473 = vpop.f32.mrb[0].mxu0
        %474 = vmatprep.mubr.bf16.mxu0 0
        %475 = vmatmul.mubr.bf16.gmra.mrb[0].mxu0 %v349
        %v476 = vpop.f32.mrb[0].mxu0
        %v477 = vadd.f32 0.0, %v476
        %v478 = vpop.f32.mrb[0].mxu0
        %v479 = vpop.f32.mrb[0].mxu0
        %v480 = vadd.f32 0.0, %v479
        %v481 = vpop.f32.mrb[0].mxu0
        %482 = vmatprep.mubr.bf16.mxu0 0
        %483 = vmatmul.mubr.bf16.gmra.mrb[0].mxu0 %v350
        %v484 = vpop.f32.mrb[0].mxu0
        %v485 = vadd.f32 0.0, %v484
        %v486 = vpop.f32.mrb[0].mxu0
        %v487 = vpop.f32.mrb[0].mxu0
        %v488 = vadd.f32 0.0, %v487
        %v489 = vpop.f32.mrb[0].mxu0
        %490 = vmatprep.mubr.bf16.mxu0 0
        %491 = vmatmul.mubr.bf16.gmra.mrb[0].mxu0 %v351
        %v492 = vpop.f32.mrb[0].mxu0
        %v493 = vadd.f32 0.0, %v492
        %v494 = vpop.f32.mrb[0].mxu0
        %v495 = vpop.f32.mrb[0].mxu0
        %v496 = vadd.f32 0.0, %v495
        %v497 = vpop.f32.mrb[0].mxu0
        %498 = vmatprep.mubr.bf16.mxu0 0
        %499 = vmatmul.mubr.bf16.gmra.mrb[0].mxu0 %v352
        %v500 = vpop.f32.mrb[0].mxu0
        %v501 = vadd.f32 0.0, %v500
        %v502 = vpop.f32.mrb[0].mxu0
        %v503 = vpop.f32.mrb[0].mxu0
        %v504 = vadd.f32 0.0, %v503
        %v505 = vpop.f32.mrb[0].mxu0
        %506 = vmatprep.mubr.bf16.mxu0 0
        %507 = vmatmul.mubr.bf16.gmra.mrb[0].mxu0 %v353
        %v508 = vpop.f32.mrb[0].mxu0
        %v509 = vadd.f32 0.0, %v508
        %v510 = vpop.f32.mrb[0].mxu0
        %v511 = vpop.f32.mrb[0].mxu0
        %v512 = vadd.f32 0.0, %v511
        %v513 = vpop.f32.mrb[0].mxu0
        %514 = vdwg.mxu0
        %v515 = vld [vmem:[%s282] sm:$0xff]
        %v516 = vld [vmem:[%s282 + $0x8] sm:$0xff]
        %v517 = vld [vmem:[%s282 + $0x10] sm:$0xff]
        %v518 = vld [vmem:[%s282 + $0x18] sm:$0xff]
        %v519 = vld [vmem:[%s282 + $0x20] sm:$0xff]
        %v520 = vld [vmem:[%s282 + $0x28] sm:$0xff]
        %v521 = vld [vmem:[%s282 + $0x30] sm:$0xff]
        %v522 = vld [vmem:[%s282 + $0x38] sm:$0xff]
        %v523 = vld [vmem:[%s282 + $0x40] sm:$0xff]
        %v524 = vld [vmem:[%s282 + $0x48] sm:$0xff]
        %v525 = vld [vmem:[%s282 + $0x50] sm:$0xff]
        %v526 = vld [vmem:[%s282 + $0x58] sm:$0xff]
        %v527 = vld [vmem:[%s282 + $0x60] sm:$0xff]
        %v528 = vld [vmem:[%s282 + $0x68] sm:$0xff]
        %v529 = vld [vmem:[%s282 + $0x70] sm:$0xff]
        %v530 = vld [vmem:[%s282 + $0x78] sm:$0xff]
        %v531 = vpack.c.bf16 %v516, %v515
        %v532 = vpack.c.bf16 %v518, %v517
        %v533 = vpack.c.bf16 %v520, %v519
        %v534 = vpack.c.bf16 %v522, %v521
        %v535 = vpack.c.bf16 %v524, %v523
        %v536 = vpack.c.bf16 %v526, %v525
        %v537 = vpack.c.bf16 %v528, %v527
        %v538 = vpack.c.bf16 %v530, %v529
        %v539 = vld [vmem:[#allocation9] sm:$0xf]
        %v540 = vld [vmem:[#allocation9 + $0x4] sm:$0xf]
        %v541 = vld [vmem:[#allocation9 + $0x8] sm:$0xf]
        %v542 = vld [vmem:[#allocation9 + $0xc] sm:$0xf]
        %v543 = vld [vmem:[#allocation9 + $0x10] sm:$0xf]
        %v544 = vld [vmem:[#allocation9 + $0x14] sm:$0xf]
        %v545 = vld [vmem:[#allocation9 + $0x18] sm:$0xf]
        %v546 = vld [vmem:[#allocation9 + $0x1c] sm:$0xf]
        %v547 = vld [vmem:[#allocation9 + $0x20] sm:$0xf]
        %v548 = vld [vmem:[#allocation9 + $0x24] sm:$0xf]
        %v549 = vld [vmem:[#allocation9 + $0x28] sm:$0xf]
        %v550 = vld [vmem:[#allocation9 + $0x2c] sm:$0xf]
        %v551 = vld [vmem:[#allocation9 + $0x30] sm:$0xf]
        %v552 = vld [vmem:[#allocation9 + $0x34] sm:$0xf]
        %v553 = vld [vmem:[#allocation9 + $0x38] sm:$0xf]
        %v554 = vld [vmem:[#allocation9 + $0x3c] sm:$0xf]
        %v571 = vunpack.c.l.b16 %v539
        %v572 = vunpack.c.l.b16 %v540
        %v573 = vunpack.c.l.b16 %v541
        %v574 = vunpack.c.l.b16 %v542
        %v575 = vunpack.c.l.b16 %v543
        %v576 = vunpack.c.l.b16 %v544
        %v577 = vunpack.c.l.b16 %v545
        %v578 = vunpack.c.l.b16 %v546
        %v579 = vunpack.c.l.b16 %v547
        %v580 = vunpack.c.l.b16 %v548
        %v581 = vunpack.c.l.b16 %v549
        %v582 = vunpack.c.l.b16 %v550
        %v583 = vunpack.c.l.b16 %v551
        %v584 = vunpack.c.l.b16 %v552
        %v585 = vunpack.c.l.b16 %v553
        %v586 = vunpack.c.l.b16 %v554
        %v587 = vpack.c.b16 %v572, %v571
        %v588 = vpack.c.b16 %v574, %v573
        %v589 = vpack.c.b16 %v576, %v575
        %v590 = vpack.c.b16 %v578, %v577
        %v591 = vpack.c.b16 %v580, %v579
        %v592 = vpack.c.b16 %v582, %v581
        %v593 = vpack.c.b16 %v584, %v583
        %v594 = vpack.c.b16 %v586, %v585
        %603 = vmatprep.subr.bf16.mxu0 0
        %604 = vmatpush1.bf16.msra.mxu0 %v587
        %605 = vmatprep.subr.bf16.mxu0 0
        %606 = vmatpush1.bf16.msra.mxu0 %v588
        %607 = vmatprep.subr.bf16.mxu0 0
        %608 = vmatpush1.bf16.msra.mxu0 %v589
        %609 = vmatprep.subr.bf16.mxu0 0
        %610 = vmatpush1.bf16.msra.mxu0 %v590
        %611 = vmatprep.subr.bf16.mxu0 0
        %612 = vmatpush1.bf16.msra.mxu0 %v591
        %613 = vmatprep.subr.bf16.mxu0 0
        %614 = vmatpush1.bf16.msra.mxu0 %v592
        %615 = vmatprep.subr.bf16.mxu0 0
        %616 = vmatpush1.bf16.msra.mxu0 %v593
        %617 = vmatprep.subr.bf16.mxu0 0
        %618 = vmatpush1.bf16.msra.mxu0 %v594
        %619 = vmatprep.subr.bf16.mxu0 0
        %620 = vmatpush1.bf16.msra.mxu0 0
        %621 = vmatprep.subr.bf16.mxu0 0
        %622 = vmatpush1.bf16.msra.mxu0 0
        %623 = vmatprep.subr.bf16.mxu0 0
        %624 = vmatpush1.bf16.msra.mxu0 0
        %625 = vmatprep.subr.bf16.mxu0 0
        %626 = vmatpush1.bf16.msra.mxu0 0
        %627 = vmatprep.subr.bf16.mxu0 0
        %628 = vmatpush1.bf16.msra.mxu0 0
        %629 = vmatprep.subr.bf16.mxu0 0
        %630 = vmatpush1.bf16.msra.mxu0 0
        %631 = vmatprep.subr.bf16.mxu0 0
        %632 = vmatpush1.bf16.msra.mxu0 0
        %633 = vmatprep.subr.bf16.mxu0 0
        %634 = vmatpush1.bf16.msra.mxu0 0
        %635 = vmatprep.mubr.bf16.mxu0 0
        %636 = vmatmul.mubr.bf16.gmra.mrb[0].mxu0 %v531
        %v637 = vpop.f32.mrb[0].mxu0
        %v638 = vadd.f32 0.0, %v637
        %v639 = vpop.f32.mrb[0].mxu0
        %v640 = vpop.f32.mrb[0].mxu0
        %v641 = vadd.f32 0.0, %v640
        %v642 = vpop.f32.mrb[0].mxu0
        %643 = vmatprep.mubr.bf16.mxu0 0
        %644 = vmatmul.mubr.bf16.gmra.mrb[0].mxu0 %v532
        %v645 = vpop.f32.mrb[0].mxu0
        %v646 = vadd.f32 0.0, %v645
        %v647 = vpop.f32.mrb[0].mxu0
        %v648 = vpop.f32.mrb[0].mxu0
        %v649 = vadd.f32 0.0, %v648
        %v650 = vpop.f32.mrb[0].mxu0
        %651 = vmatprep.mubr.bf16.mxu0 0
        %652 = vmatmul.mubr.bf16.gmra.mrb[0].mxu0 %v533
        %v653 = vpop.f32.mrb[0].mxu0
        %v654 = vadd.f32 0.0, %v653
        %v655 = vpop.f32.mrb[0].mxu0
        %v656 = vpop.f32.mrb[0].mxu0
        %v657 = vadd.f32 0.0, %v656
        %v658 = vpop.f32.mrb[0].mxu0
        %659 = vmatprep.mubr.bf16.mxu0 0
        %660 = vmatmul.mubr.bf16.gmra.mrb[0].mxu0 %v534
        %v661 = vpop.f32.mrb[0].mxu0
        %v662 = vadd.f32 0.0, %v661
        %v663 = vpop.f32.mrb[0].mxu0
        %v664 = vpop.f32.mrb[0].mxu0
        %v665 = vadd.f32 0.0, %v664
        %v666 = vpop.f32.mrb[0].mxu0
        %667 = vmatprep.mubr.bf16.mxu0 0
        %668 = vmatmul.mubr.bf16.gmra.mrb[0].mxu0 %v535
        %v669 = vpop.f32.mrb[0].mxu0
        %v670 = vadd.f32 0.0, %v669
        %v671 = vpop.f32.mrb[0].mxu0
        %v672 = vpop.f32.mrb[0].mxu0
        %v673 = vadd.f32 0.0, %v672
        %v674 = vpop.f32.mrb[0].mxu0
        %675 = vmatprep.mubr.bf16.mxu0 0
        %676 = vmatmul.mubr.bf16.gmra.mrb[0].mxu0 %v536
        %v677 = vpop.f32.mrb[0].mxu0
        %v678 = vadd.f32 0.0, %v677
        %v679 = vpop.f32.mrb[0].mxu0
        %v680 = vpop.f32.mrb[0].mxu0
        %v681 = vadd.f32 0.0, %v680
        %v682 = vpop.f32.mrb[0].mxu0
        %683 = vmatprep.mubr.bf16.mxu0 0
        %684 = vmatmul.mubr.bf16.gmra.mrb[0].mxu0 %v537
        %v685 = vpop.f32.mrb[0].mxu0
        %v686 = vadd.f32 0.0, %v685
        %v687 = vpop.f32.mrb[0].mxu0
        %v688 = vpop.f32.mrb[0].mxu0
        %v689 = vadd.f32 0.0, %v688
        %v690 = vpop.f32.mrb[0].mxu0
        %691 = vmatprep.mubr.bf16.mxu0 0
        %692 = vmatmul.mubr.bf16.gmra.mrb[0].mxu0 %v538
        %v693 = vpop.f32.mrb[0].mxu0
        %v694 = vadd.f32 0.0, %v693
        %v695 = vpop.f32.mrb[0].mxu0
        %v696 = vpop.f32.mrb[0].mxu0
        %v697 = vadd.f32 0.0, %v696
        %v698 = vpop.f32.mrb[0].mxu0
        %699 = vdwg.mxu0
        %v700 = vmax.f32 %v453, 0.0
        %v701 = vmax.f32 %v456, 0.0
        %v702 = vmax.f32 %v461, 0.0
        %v703 = vmax.f32 %v464, 0.0
        %v704 = vmax.f32 %v469, 0.0
        %v705 = vmax.f32 %v472, 0.0
        %v706 = vmax.f32 %v477, 0.0
        %v707 = vmax.f32 %v480, 0.0
        %v708 = vmax.f32 %v485, 0.0
        %v709 = vmax.f32 %v488, 0.0
        %v710 = vmax.f32 %v493, 0.0
        %v711 = vmax.f32 %v496, 0.0
        %v712 = vmax.f32 %v501, 0.0
        %v713 = vmax.f32 %v504, 0.0
        %v714 = vmax.f32 %v509, 0.0
        %v715 = vmax.f32 %v512, 0.0
        %v716 = vmax.f32 %v638, 0.0
        %v717 = vmax.f32 %v641, 0.0
        %v718 = vmax.f32 %v646, 0.0
        %v719 = vmax.f32 %v649, 0.0
        %v720 = vmax.f32 %v654, 0.0
        %v721 = vmax.f32 %v657, 0.0
        %v722 = vmax.f32 %v662, 0.0
        %v723 = vmax.f32 %v665, 0.0
        %v724 = vmax.f32 %v670, 0.0
        %v725 = vmax.f32 %v673, 0.0
        %v726 = vmax.f32 %v678, 0.0
        %v727 = vmax.f32 %v681, 0.0
        %v728 = vmax.f32 %v686, 0.0
        %v729 = vmax.f32 %v689, 0.0
        %v730 = vmax.f32 %v694, 0.0
        %v731 = vmax.f32 %v697, 0.0
        %v732 = vmul.f32 %v700, %v700
        %v733 = vmul.f32 %v701, %v701
        %v734 = vmul.f32 %v702, %v702
        %v735 = vmul.f32 %v703, %v703
        %v736 = vmul.f32 %v704, %v704
        %v737 = vmul.f32 %v705, %v705
        %v738 = vmul.f32 %v706, %v706
        %v739 = vmul.f32 %v707, %v707
        %v740 = vmul.f32 %v708, %v708
        %v741 = vmul.f32 %v709, %v709
        %v742 = vmul.f32 %v710, %v710
        %v743 = vmul.f32 %v711, %v711
        %v744 = vmul.f32 %v712, %v712
        %v745 = vmul.f32 %v713, %v713
        %v746 = vmul.f32 %v714, %v714
        %v747 = vmul.f32 %v715, %v715
        %748 = vadd.xlane.f32.xlu0 %v732
        %v749 = vpop.xlane.xlu0 %748
        %750 = vadd.xlane.f32.xlu0 %v733
        %v751 = vpop.xlane.xlu0 %750
        %752 = vadd.xlane.f32.xlu0 %v734
        %v753 = vpop.xlane.xlu0 %752
        %754 = vadd.xlane.f32.xlu0 %v735
        %v755 = vpop.xlane.xlu0 %754
        %756 = vadd.xlane.f32.xlu0 %v736
        %v757 = vpop.xlane.xlu0 %756
        %758 = vadd.xlane.f32.xlu0 %v737
        %v759 = vpop.xlane.xlu0 %758
        %760 = vadd.xlane.f32.xlu0 %v738
        %v761 = vpop.xlane.xlu0 %760
        %762 = vadd.xlane.f32.xlu0 %v739
        %v763 = vpop.xlane.xlu0 %762
        %764 = vadd.xlane.f32.xlu0 %v740
        %v765 = vpop.xlane.xlu0 %764
        %766 = vadd.xlane.f32.xlu0 %v741
        %v767 = vpop.xlane.xlu0 %766
        %768 = vadd.xlane.f32.xlu0 %v742
        %v769 = vpop.xlane.xlu0 %768
        %770 = vadd.xlane.f32.xlu0 %v743
        %v771 = vpop.xlane.xlu0 %770
        %772 = vadd.xlane.f32.xlu0 %v744
        %v773 = vpop.xlane.xlu0 %772
        %774 = vadd.xlane.f32.xlu0 %v745
        %v775 = vpop.xlane.xlu0 %774
        %776 = vadd.xlane.f32.xlu0 %v746
        %v777 = vpop.xlane.xlu0 %776
        %778 = vadd.xlane.f32.xlu0 %v747
        %v779 = vpop.xlane.xlu0 %778
        %v780 = vmax.f32 %v749, 1e-24
        %v781 = vmax.f32 %v751, 1e-24
        %v782 = vmax.f32 %v753, 1e-24
        %v783 = vmax.f32 %v755, 1e-24
        %v784 = vmax.f32 %v757, 1e-24
        %v785 = vmax.f32 %v759, 1e-24
        %v786 = vmax.f32 %v761, 1e-24
        %v787 = vmax.f32 %v763, 1e-24
        %v788 = vmax.f32 %v765, 1e-24
        %v789 = vmax.f32 %v767, 1e-24
        %v790 = vmax.f32 %v769, 1e-24
        %v791 = vmax.f32 %v771, 1e-24
        %v792 = vmax.f32 %v773, 1e-24
        %v793 = vmax.f32 %v775, 1e-24
        %v794 = vmax.f32 %v777, 1e-24
        %v795 = vmax.f32 %v779, 1e-24
        %v796 = vrsqrt.pop %v780
        %v797 = vrsqrt.pop %v781
        %v798 = vrsqrt.pop %v782
        %v799 = vrsqrt.pop %v783
        %v800 = vrsqrt.pop %v784
        %v801 = vrsqrt.pop %v785
        %v802 = vrsqrt.pop %v786
        %v803 = vrsqrt.pop %v787
        %v804 = vrsqrt.pop %v788
        %v805 = vrsqrt.pop %v789
        %v806 = vrsqrt.pop %v790
        %v807 = vrsqrt.pop %v791
        %v808 = vrsqrt.pop %v792
        %v809 = vrsqrt.pop %v793
        %v810 = vrsqrt.pop %v794
        %v811 = vrsqrt.pop %v795
        %v812 = vmul.f32 %v700, %v796
        %v813 = vmul.f32 %v701, %v797
        %v814 = vmul.f32 %v702, %v798
        %v815 = vmul.f32 %v703, %v799
        %v816 = vmul.f32 %v704, %v800
        %v817 = vmul.f32 %v705, %v801
        %v818 = vmul.f32 %v706, %v802
        %v819 = vmul.f32 %v707, %v803
        %v820 = vmul.f32 %v708, %v804
        %v821 = vmul.f32 %v709, %v805
        %v822 = vmul.f32 %v710, %v806
        %v823 = vmul.f32 %v711, %v807
        %v824 = vmul.f32 %v712, %v808
        %v825 = vmul.f32 %v713, %v809
        %v826 = vmul.f32 %v714, %v810
        %v827 = vmul.f32 %v715, %v811
        %v828 = vmul.f32 %v716, %v716
        %v829 = vmul.f32 %v717, %v717
        %v830 = vmul.f32 %v718, %v718
        %v831 = vmul.f32 %v719, %v719
        %v832 = vmul.f32 %v720, %v720
        %v833 = vmul.f32 %v721, %v721
        %v834 = vmul.f32 %v722, %v722
        %v835 = vmul.f32 %v723, %v723
        %v836 = vmul.f32 %v724, %v724
        %v837 = vmul.f32 %v725, %v725
        %v838 = vmul.f32 %v726, %v726
        %v839 = vmul.f32 %v727, %v727
        %v840 = vmul.f32 %v728, %v728
        %v841 = vmul.f32 %v729, %v729
        %v842 = vmul.f32 %v730, %v730
        %v843 = vmul.f32 %v731, %v731
        %844 = vadd.xlane.f32.xlu0 %v828
        %v845 = vpop.xlane.xlu0 %844
        %846 = vadd.xlane.f32.xlu0 %v829
        %v847 = vpop.xlane.xlu0 %846
        %848 = vadd.xlane.f32.xlu0 %v830
        %v849 = vpop.xlane.xlu0 %848
        %850 = vadd.xlane.f32.xlu0 %v831
        %v851 = vpop.xlane.xlu0 %850
        %852 = vadd.xlane.f32.xlu0 %v832
        %v853 = vpop.xlane.xlu0 %852
        %854 = vadd.xlane.f32.xlu0 %v833
        %v855 = vpop.xlane.xlu0 %854
        %856 = vadd.xlane.f32.xlu0 %v834
        %v857 = vpop.xlane.xlu0 %856
        %858 = vadd.xlane.f32.xlu0 %v835
        %v859 = vpop.xlane.xlu0 %858
        %860 = vadd.xlane.f32.xlu0 %v836
        %v861 = vpop.xlane.xlu0 %860
        %862 = vadd.xlane.f32.xlu0 %v837
        %v863 = vpop.xlane.xlu0 %862
        %864 = vadd.xlane.f32.xlu0 %v838
        %v865 = vpop.xlane.xlu0 %864
        %866 = vadd.xlane.f32.xlu0 %v839
        %v867 = vpop.xlane.xlu0 %866
        %868 = vadd.xlane.f32.xlu0 %v840
        %v869 = vpop.xlane.xlu0 %868
        %870 = vadd.xlane.f32.xlu0 %v841
        %v871 = vpop.xlane.xlu0 %870
        %872 = vadd.xlane.f32.xlu0 %v842
        %v873 = vpop.xlane.xlu0 %872
        %874 = vadd.xlane.f32.xlu0 %v843
        %v875 = vpop.xlane.xlu0 %874
        %v876 = vmax.f32 %v845, 1e-24
        %v877 = vmax.f32 %v847, 1e-24
        %v878 = vmax.f32 %v849, 1e-24
        %v879 = vmax.f32 %v851, 1e-24
        %v880 = vmax.f32 %v853, 1e-24
        %v881 = vmax.f32 %v855, 1e-24
        %v882 = vmax.f32 %v857, 1e-24
        %v883 = vmax.f32 %v859, 1e-24
        %v884 = vmax.f32 %v861, 1e-24
        %v885 = vmax.f32 %v863, 1e-24
        %v886 = vmax.f32 %v865, 1e-24
        %v887 = vmax.f32 %v867, 1e-24
        %v888 = vmax.f32 %v869, 1e-24
        %v889 = vmax.f32 %v871, 1e-24
        %v890 = vmax.f32 %v873, 1e-24
        %v891 = vmax.f32 %v875, 1e-24
        %v892 = vrsqrt.pop %v876
        %v893 = vrsqrt.pop %v877
        %v894 = vrsqrt.pop %v878
        %v895 = vrsqrt.pop %v879
        %v896 = vrsqrt.pop %v880
        %v897 = vrsqrt.pop %v881
        %v898 = vrsqrt.pop %v882
        %v899 = vrsqrt.pop %v883
        %v900 = vrsqrt.pop %v884
        %v901 = vrsqrt.pop %v885
        %v902 = vrsqrt.pop %v886
        %v903 = vrsqrt.pop %v887
        %v904 = vrsqrt.pop %v888
        %v905 = vrsqrt.pop %v889
        %v906 = vrsqrt.pop %v890
        %v907 = vrsqrt.pop %v891
        %v908 = vmul.f32 %v716, %v892
        %v909 = vmul.f32 %v717, %v893
        %v910 = vmul.f32 %v718, %v894
        %v911 = vmul.f32 %v719, %v895
        %v912 = vmul.f32 %v720, %v896
        %v913 = vmul.f32 %v721, %v897
        %v914 = vmul.f32 %v722, %v898
        %v915 = vmul.f32 %v723, %v899
        %v916 = vmul.f32 %v724, %v900
        %v917 = vmul.f32 %v725, %v901
        %v918 = vmul.f32 %v726, %v902
        %v919 = vmul.f32 %v727, %v903
        %v920 = vmul.f32 %v728, %v904
        %v921 = vmul.f32 %v729, %v905
        %v922 = vmul.f32 %v730, %v906
        %v923 = vmul.f32 %v731, %v907
        %v924 = vpack.c.bf16 %v813, %v812
        %v925 = vpack.c.bf16 %v815, %v814
        %v926 = vpack.c.bf16 %v817, %v816
        %v927 = vpack.c.bf16 %v819, %v818
        %v928 = vpack.c.bf16 %v821, %v820
        %v929 = vpack.c.bf16 %v823, %v822
        %v930 = vpack.c.bf16 %v825, %v824
        %v931 = vpack.c.bf16 %v827, %v826
        %932 = vst [vmem:[#allocation2] sm:$0xff] %v924
        %933 = vst [vmem:[#allocation2 + $0x10] sm:$0xff] %v925
        %934 = vst [vmem:[#allocation2 + $0x20] sm:$0xff] %v926
        %935 = vst [vmem:[#allocation2 + $0x30] sm:$0xff] %v927
        %936 = vst [vmem:[#allocation2 + $0x40] sm:$0xff] %v928
        %937 = vst [vmem:[#allocation2 + $0x50] sm:$0xff] %v929
        %938 = vst [vmem:[#allocation2 + $0x60] sm:$0xff] %v930
        %939 = vst [vmem:[#allocation2 + $0x70] sm:$0xff] %v931
        %v940 = vpack.c.bf16 %v909, %v908
        %v941 = vpack.c.bf16 %v911, %v910
        %v942 = vpack.c.bf16 %v913, %v912
        %v943 = vpack.c.bf16 %v915, %v914
        %v944 = vpack.c.bf16 %v917, %v916
        %v945 = vpack.c.bf16 %v919, %v918
        %v946 = vpack.c.bf16 %v921, %v920
        %v947 = vpack.c.bf16 %v923, %v922
        %948 = vst [vmem:[#allocation2 + $0x8] sm:$0xff] %v940
        %949 = vst [vmem:[#allocation2 + $0x18] sm:$0xff] %v941
        %950 = vst [vmem:[#allocation2 + $0x28] sm:$0xff] %v942
        %951 = vst [vmem:[#allocation2 + $0x38] sm:$0xff] %v943
        %952 = vst [vmem:[#allocation2 + $0x48] sm:$0xff] %v944
        %953 = vst [vmem:[#allocation2 + $0x58] sm:$0xff] %v945
        %954 = vst [vmem:[#allocation2 + $0x68] sm:$0xff] %v946
        %955 = vst [vmem:[#allocation2 + $0x78] sm:$0xff] %v947
        %v956 = vld [vmem:[#allocation2] sm:$0xff]
        %v957 = vld [vmem:[#allocation2 + $0x8] sm:$0xff]
        %v958 = vld [vmem:[#allocation2 + $0x10] sm:$0xff]
        %v959 = vld [vmem:[#allocation2 + $0x18] sm:$0xff]
        %v960 = vld [vmem:[#allocation2 + $0x20] sm:$0xff]
        %v961 = vld [vmem:[#allocation2 + $0x28] sm:$0xff]
        %v962 = vld [vmem:[#allocation2 + $0x30] sm:$0xff]
        %v963 = vld [vmem:[#allocation2 + $0x38] sm:$0xff]
        %v964 = vld [vmem:[#allocation2 + $0x40] sm:$0xff]
        %v965 = vld [vmem:[#allocation2 + $0x48] sm:$0xff]
        %v966 = vld [vmem:[#allocation2 + $0x50] sm:$0xff]
        %v967 = vld [vmem:[#allocation2 + $0x58] sm:$0xff]
        %v968 = vld [vmem:[#allocation2 + $0x60] sm:$0xff]
        %v969 = vld [vmem:[#allocation2 + $0x68] sm:$0xff]
        %v970 = vld [vmem:[#allocation2 + $0x70] sm:$0xff]
        %v971 = vld [vmem:[#allocation2 + $0x78] sm:$0xff]
        %v972 = vld [vmem:[#allocation11] sm:$0xff]
        %v973 = vld [vmem:[#allocation11 + $0x8] sm:$0xff]
        %v974 = vld [vmem:[#allocation11 + $0x10] sm:$0xff]
        %v975 = vld [vmem:[#allocation11 + $0x18] sm:$0xff]
        %v976 = vld [vmem:[#allocation11 + $0x20] sm:$0xff]
        %v977 = vld [vmem:[#allocation11 + $0x28] sm:$0xff]
        %v978 = vld [vmem:[#allocation11 + $0x30] sm:$0xff]
        %v979 = vld [vmem:[#allocation11 + $0x38] sm:$0xff]
        %v980 = vld [vmem:[#allocation11 + $0x40] sm:$0xff]
        %v981 = vld [vmem:[#allocation11 + $0x48] sm:$0xff]
        %v982 = vld [vmem:[#allocation11 + $0x50] sm:$0xff]
        %v983 = vld [vmem:[#allocation11 + $0x58] sm:$0xff]
        %v984 = vld [vmem:[#allocation11 + $0x60] sm:$0xff]
        %v985 = vld [vmem:[#allocation11 + $0x68] sm:$0xff]
        %v986 = vld [vmem:[#allocation11 + $0x70] sm:$0xff]
        %v987 = vld [vmem:[#allocation11 + $0x78] sm:$0xff]
        %v988 = vld [vmem:[#allocation11 + $0x80] sm:$0xff]
        %v989 = vld [vmem:[#allocation11 + $0x88] sm:$0xff]
        %v990 = vld [vmem:[#allocation11 + $0x90] sm:$0xff]
        %v991 = vld [vmem:[#allocation11 + $0x98] sm:$0xff]
        %v992 = vld [vmem:[#allocation11 + $0xa0] sm:$0xff]
        %v993 = vld [vmem:[#allocation11 + $0xa8] sm:$0xff]
        %v994 = vld [vmem:[#allocation11 + $0xb0] sm:$0xff]
        %v995 = vld [vmem:[#allocation11 + $0xb8] sm:$0xff]
        %v996 = vld [vmem:[#allocation11 + $0xc0] sm:$0xff]
        %v997 = vld [vmem:[#allocation11 + $0xc8] sm:$0xff]
        %v998 = vld [vmem:[#allocation11 + $0xd0] sm:$0xff]
        %v999 = vld [vmem:[#allocation11 + $0xd8] sm:$0xff]
        %v1000 = vld [vmem:[#allocation11 + $0xe0] sm:$0xff]
        %v1001 = vld [vmem:[#allocation11 + $0xe8] sm:$0xff]
        %v1002 = vld [vmem:[#allocation11 + $0xf0] sm:$0xff]
        %v1003 = vld [vmem:[#allocation11 + $0xf8] sm:$0xff]
        %v1036 = vunpack.c.l.b16 %v972
        %v1037 = vunpack.c.h.b16 %v972
        %v1038 = vunpack.c.l.b16 %v973
        %v1039 = vunpack.c.h.b16 %v973
        %v1040 = vunpack.c.l.b16 %v974
        %v1041 = vunpack.c.h.b16 %v974
        %v1042 = vunpack.c.l.b16 %v975
        %v1043 = vunpack.c.h.b16 %v975
        %v1044 = vunpack.c.l.b16 %v976
        %v1045 = vunpack.c.h.b16 %v976
        %v1046 = vunpack.c.l.b16 %v977
        %v1047 = vunpack.c.h.b16 %v977
        %v1048 = vunpack.c.l.b16 %v978
        %v1049 = vunpack.c.h.b16 %v978
        %v1050 = vunpack.c.l.b16 %v979
        %v1051 = vunpack.c.h.b16 %v979
        %v1052 = vunpack.c.l.b16 %v980
        %v1053 = vunpack.c.h.b16 %v980
        %v1054 = vunpack.c.l.b16 %v981
        %v1055 = vunpack.c.h.b16 %v981
        %v1056 = vunpack.c.l.b16 %v982
        %v1057 = vunpack.c.h.b16 %v982
        %v1058 = vunpack.c.l.b16 %v983
        %v1059 = vunpack.c.h.b16 %v983
        %v1060 = vunpack.c.l.b16 %v984
        %v1061 = vunpack.c.h.b16 %v984
        %v1062 = vunpack.c.l.b16 %v985
        %v1063 = vunpack.c.h.b16 %v985
        %v1064 = vunpack.c.l.b16 %v986
        %v1065 = vunpack.c.h.b16 %v986
        %v1066 = vunpack.c.l.b16 %v987
        %v1067 = vunpack.c.h.b16 %v987
        %v1068 = vunpack.c.l.b16 %v988
        %v1069 = vunpack.c.h.b16 %v988
        %v1070 = vunpack.c.l.b16 %v989
        %v1071 = vunpack.c.h.b16 %v989
        %v1072 = vunpack.c.l.b16 %v990
        %v1073 = vunpack.c.h.b16 %v990
        %v1074 = vunpack.c.l.b16 %v991
        %v1075 = vunpack.c.h.b16 %v991
        %v1076 = vunpack.c.l.b16 %v992
        %v1077 = vunpack.c.h.b16 %v992
        %v1078 = vunpack.c.l.b16 %v993
        %v1079 = vunpack.c.h.b16 %v993
        %v1080 = vunpack.c.l.b16 %v994
        %v1081 = vunpack.c.h.b16 %v994
        %v1082 = vunpack.c.l.b16 %v995
        %v1083 = vunpack.c.h.b16 %v995
        %v1084 = vunpack.c.l.b16 %v996
        %v1085 = vunpack.c.h.b16 %v996
        %v1086 = vunpack.c.l.b16 %v997
        %v1087 = vunpack.c.h.b16 %v997
        %v1088 = vunpack.c.l.b16 %v998
        %v1089 = vunpack.c.h.b16 %v998
        %v1090 = vunpack.c.l.b16 %v999
        %v1091 = vunpack.c.h.b16 %v999
        %v1092 = vunpack.c.l.b16 %v1000
        %v1093 = vunpack.c.h.b16 %v1000
        %v1094 = vunpack.c.l.b16 %v1001
        %v1095 = vunpack.c.h.b16 %v1001
        %v1096 = vunpack.c.l.b16 %v1002
        %v1097 = vunpack.c.h.b16 %v1002
        %v1098 = vunpack.c.l.b16 %v1003
        %v1099 = vunpack.c.h.b16 %v1003
        %v1100 = vpack.c.b16 %v1038, %v1036
        %v1101 = vpack.c.b16 %v1039, %v1037
        %v1102 = vpack.c.b16 %v1042, %v1040
        %v1103 = vpack.c.b16 %v1043, %v1041
        %v1104 = vpack.c.b16 %v1046, %v1044
        %v1105 = vpack.c.b16 %v1047, %v1045
        %v1106 = vpack.c.b16 %v1050, %v1048
        %v1107 = vpack.c.b16 %v1051, %v1049
        %v1108 = vpack.c.b16 %v1054, %v1052
        %v1109 = vpack.c.b16 %v1055, %v1053
        %v1110 = vpack.c.b16 %v1058, %v1056
        %v1111 = vpack.c.b16 %v1059, %v1057
        %v1112 = vpack.c.b16 %v1062, %v1060
        %v1113 = vpack.c.b16 %v1063, %v1061
        %v1114 = vpack.c.b16 %v1066, %v1064
        %v1115 = vpack.c.b16 %v1067, %v1065
        %v1116 = vpack.c.b16 %v1070, %v1068
        %v1117 = vpack.c.b16 %v1071, %v1069
        %v1118 = vpack.c.b16 %v1074, %v1072
        %v1119 = vpack.c.b16 %v1075, %v1073
        %v1120 = vpack.c.b16 %v1078, %v1076
        %v1121 = vpack.c.b16 %v1079, %v1077
        %v1122 = vpack.c.b16 %v1082, %v1080
        %v1123 = vpack.c.b16 %v1083, %v1081
        %v1124 = vpack.c.b16 %v1086, %v1084
        %v1125 = vpack.c.b16 %v1087, %v1085
        %v1126 = vpack.c.b16 %v1090, %v1088
        %v1127 = vpack.c.b16 %v1091, %v1089
        %v1128 = vpack.c.b16 %v1094, %v1092
        %v1129 = vpack.c.b16 %v1095, %v1093
        %v1130 = vpack.c.b16 %v1098, %v1096
        %v1131 = vpack.c.b16 %v1099, %v1097
        %1164 = vmatprep.subr.bf16.mxu0 %v1101
        %1165 = vmatpush1.bf16.msra.mxu0 %v1100
        %1166 = vmatprep.subr.bf16.mxu0 %v1103
        %1167 = vmatpush1.bf16.msra.mxu0 %v1102
        %1168 = vmatprep.subr.bf16.mxu0 %v1105
        %1169 = vmatpush1.bf16.msra.mxu0 %v1104
        %1170 = vmatprep.subr.bf16.mxu0 %v1107
        %1171 = vmatpush1.bf16.msra.mxu0 %v1106
        %1172 = vmatprep.subr.bf16.mxu0 %v1109
        %1173 = vmatpush1.bf16.msra.mxu0 %v1108
        %1174 = vmatprep.subr.bf16.mxu0 %v1111
        %1175 = vmatpush1.bf16.msra.mxu0 %v1110
        %1176 = vmatprep.subr.bf16.mxu0 %v1113
        %1177 = vmatpush1.bf16.msra.mxu0 %v1112
        %1178 = vmatprep.subr.bf16.mxu0 %v1115
        %1179 = vmatpush1.bf16.msra.mxu0 %v1114
        %1180 = vmatprep.subr.bf16.mxu0 %v1117
        %1181 = vmatpush1.bf16.msra.mxu0 %v1116
        %1182 = vmatprep.subr.bf16.mxu0 %v1119
        %1183 = vmatpush1.bf16.msra.mxu0 %v1118
        %1184 = vmatprep.subr.bf16.mxu0 %v1121
        %1185 = vmatpush1.bf16.msra.mxu0 %v1120
        %1186 = vmatprep.subr.bf16.mxu0 %v1123
        %1187 = vmatpush1.bf16.msra.mxu0 %v1122
        %1188 = vmatprep.subr.bf16.mxu0 %v1125
        %1189 = vmatpush1.bf16.msra.mxu0 %v1124
        %1190 = vmatprep.subr.bf16.mxu0 %v1127
        %1191 = vmatpush1.bf16.msra.mxu0 %v1126
        %1192 = vmatprep.subr.bf16.mxu0 %v1129
        %1193 = vmatpush1.bf16.msra.mxu0 %v1128
        %1194 = vmatprep.subr.bf16.mxu0 %v1131
        %1195 = vmatpush1.bf16.msra.mxu0 %v1130
        %1196 = vmatprep.mubr.bf16.mxu0 %v957
        %1197 = vmatmul.mubr.bf16.gmra.mrb[0].mxu0 %v956
        %v1198 = vpop.f32.mrb[0].mxu0
        %v1199 = vadd.f32 0.0, %v1198
        %v1200 = vpop.f32.mrb[0].mxu0
        %v1201 = vadd.f32 0.0, %v1200
        %v1202 = vpop.f32.mrb[0].mxu0
        %v1203 = vadd.f32 0.0, %v1202
        %v1204 = vpop.f32.mrb[0].mxu0
        %v1205 = vadd.f32 0.0, %v1204
        %1206 = vmatprep.mubr.bf16.mxu0 %v959
        %1207 = vmatmul.mubr.bf16.gmra.mrb[0].mxu0 %v958
        %v1208 = vpop.f32.mrb[0].mxu0
        %v1209 = vadd.f32 0.0, %v1208
        %v1210 = vpop.f32.mrb[0].mxu0
        %v1211 = vadd.f32 0.0, %v1210
        %v1212 = vpop.f32.mrb[0].mxu0
        %v1213 = vadd.f32 0.0, %v1212
        %v1214 = vpop.f32.mrb[0].mxu0
        %v1215 = vadd.f32 0.0, %v1214
        %1216 = vmatprep.mubr.bf16.mxu0 %v961
        %1217 = vmatmul.mubr.bf16.gmra.mrb[0].mxu0 %v960
        %v1218 = vpop.f32.mrb[0].mxu0
        %v1219 = vadd.f32 0.0, %v1218
        %v1220 = vpop.f32.mrb[0].mxu0
        %v1221 = vadd.f32 0.0, %v1220
        %v1222 = vpop.f32.mrb[0].mxu0
        %v1223 = vadd.f32 0.0, %v1222
        %v1224 = vpop.f32.mrb[0].mxu0
        %v1225 = vadd.f32 0.0, %v1224
        %1226 = vmatprep.mubr.bf16.mxu0 %v963
        %1227 = vmatmul.mubr.bf16.gmra.mrb[0].mxu0 %v962
        %v1228 = vpop.f32.mrb[0].mxu0
        %v1229 = vadd.f32 0.0, %v1228
        %v1230 = vpop.f32.mrb[0].mxu0
        %v1231 = vadd.f32 0.0, %v1230
        %v1232 = vpop.f32.mrb[0].mxu0
        %v1233 = vadd.f32 0.0, %v1232
        %v1234 = vpop.f32.mrb[0].mxu0
        %v1235 = vadd.f32 0.0, %v1234
        %1236 = vmatprep.mubr.bf16.mxu0 %v965
        %1237 = vmatmul.mubr.bf16.gmra.mrb[0].mxu0 %v964
        %v1238 = vpop.f32.mrb[0].mxu0
        %v1239 = vadd.f32 0.0, %v1238
        %v1240 = vpop.f32.mrb[0].mxu0
        %v1241 = vadd.f32 0.0, %v1240
        %v1242 = vpop.f32.mrb[0].mxu0
        %v1243 = vadd.f32 0.0, %v1242
        %v1244 = vpop.f32.mrb[0].mxu0
        %v1245 = vadd.f32 0.0, %v1244
        %1246 = vmatprep.mubr.bf16.mxu0 %v967
        %1247 = vmatmul.mubr.bf16.gmra.mrb[0].mxu0 %v966
        %v1248 = vpop.f32.mrb[0].mxu0
        %v1249 = vadd.f32 0.0, %v1248
        %v1250 = vpop.f32.mrb[0].mxu0
        %v1251 = vadd.f32 0.0, %v1250
        %v1252 = vpop.f32.mrb[0].mxu0
        %v1253 = vadd.f32 0.0, %v1252
        %v1254 = vpop.f32.mrb[0].mxu0
        %v1255 = vadd.f32 0.0, %v1254
        %1256 = vmatprep.mubr.bf16.mxu0 %v969
        %1257 = vmatmul.mubr.bf16.gmra.mrb[0].mxu0 %v968
        %v1258 = vpop.f32.mrb[0].mxu0
        %v1259 = vadd.f32 0.0, %v1258
        %v1260 = vpop.f32.mrb[0].mxu0
        %v1261 = vadd.f32 0.0, %v1260
        %v1262 = vpop.f32.mrb[0].mxu0
        %v1263 = vadd.f32 0.0, %v1262
        %v1264 = vpop.f32.mrb[0].mxu0
        %v1265 = vadd.f32 0.0, %v1264
        %1266 = vmatprep.mubr.bf16.mxu0 %v971
        %1267 = vmatmul.mubr.bf16.gmra.mrb[0].mxu0 %v970
        %v1268 = vpop.f32.mrb[0].mxu0
        %v1269 = vadd.f32 0.0, %v1268
        %v1270 = vpop.f32.mrb[0].mxu0
        %v1271 = vadd.f32 0.0, %v1270
        %v1272 = vpop.f32.mrb[0].mxu0
        %v1273 = vadd.f32 0.0, %v1272
        %v1274 = vpop.f32.mrb[0].mxu0
        %v1275 = vadd.f32 0.0, %v1274
        %1276 = vdwg.mxu0
        %v1277 = vadd.f32 %v1199, %v1201
        %v1278 = vadd.f32 %v1203, %v1205
        %v1279 = vadd.f32 %v1209, %v1211
        %v1280 = vadd.f32 %v1213, %v1215
        %v1281 = vadd.f32 %v1219, %v1221
        %v1282 = vadd.f32 %v1223, %v1225
        %v1283 = vadd.f32 %v1229, %v1231
        %v1284 = vadd.f32 %v1233, %v1235
        %v1285 = vadd.f32 %v1239, %v1241
        %v1286 = vadd.f32 %v1243, %v1245
        %v1287 = vadd.f32 %v1249, %v1251
        %v1288 = vadd.f32 %v1253, %v1255
        %v1289 = vadd.f32 %v1259, %v1261
        %v1290 = vadd.f32 %v1263, %v1265
        %v1291 = vadd.f32 %v1269, %v1271
        %v1292 = vadd.f32 %v1273, %v1275
        %v1293 = vmul.f32 %v1199, %v1199
        %v1294 = vmul.f32 %v1203, %v1203
        %v1295 = vmul.f32 %v1209, %v1209
        %v1296 = vmul.f32 %v1213, %v1213
        %v1297 = vmul.f32 %v1219, %v1219
        %v1298 = vmul.f32 %v1223, %v1223
        %v1299 = vmul.f32 %v1229, %v1229
        %v1300 = vmul.f32 %v1233, %v1233
        %v1301 = vmul.f32 %v1239, %v1239
        %v1302 = vmul.f32 %v1243, %v1243
        %v1303 = vmul.f32 %v1249, %v1249
        %v1304 = vmul.f32 %v1253, %v1253
        %v1305 = vmul.f32 %v1259, %v1259
        %v1306 = vmul.f32 %v1263, %v1263
        %v1307 = vmul.f32 %v1269, %v1269
        %v1308 = vmul.f32 %v1273, %v1273
        %1309 = vadd.xlane.f32.xlu0 %v1293
        %v1310 = vpop.xlane.xlu0 %1309
        %1311 = vadd.xlane.f32.xlu0 %v1294
        %v1312 = vpop.xlane.xlu0 %1311
        %1313 = vadd.xlane.f32.xlu0 %v1295
        %v1314 = vpop.xlane.xlu0 %1313
        %1315 = vadd.xlane.f32.xlu0 %v1296
        %v1316 = vpop.xlane.xlu0 %1315
        %1317 = vadd.xlane.f32.xlu0 %v1297
        %v1318 = vpop.xlane.xlu0 %1317
        %1319 = vadd.xlane.f32.xlu0 %v1298
        %v1320 = vpop.xlane.xlu0 %1319
        %1321 = vadd.xlane.f32.xlu0 %v1299
        %v1322 = vpop.xlane.xlu0 %1321
        %1323 = vadd.xlane.f32.xlu0 %v1300
        %v1324 = vpop.xlane.xlu0 %1323
        %1325 = vadd.xlane.f32.xlu0 %v1301
        %v1326 = vpop.xlane.xlu0 %1325
        %1327 = vadd.xlane.f32.xlu0 %v1302
        %v1328 = vpop.xlane.xlu0 %1327
        %1329 = vadd.xlane.f32.xlu0 %v1303
        %v1330 = vpop.xlane.xlu0 %1329
        %1331 = vadd.xlane.f32.xlu0 %v1304
        %v1332 = vpop.xlane.xlu0 %1331
        %1333 = vadd.xlane.f32.xlu0 %v1305
        %v1334 = vpop.xlane.xlu0 %1333
        %1335 = vadd.xlane.f32.xlu0 %v1306
        %v1336 = vpop.xlane.xlu0 %1335
        %1337 = vadd.xlane.f32.xlu0 %v1307
        %v1338 = vpop.xlane.xlu0 %1337
        %1339 = vadd.xlane.f32.xlu0 %v1308
        %v1340 = vpop.xlane.xlu0 %1339
        %v1341 = vmax.f32 %v1310, 1e-24
        %v1342 = vmax.f32 %v1312, 1e-24
        %v1343 = vmax.f32 %v1314, 1e-24
        %v1344 = vmax.f32 %v1316, 1e-24
        %v1345 = vmax.f32 %v1318, 1e-24
        %v1346 = vmax.f32 %v1320, 1e-24
        %v1347 = vmax.f32 %v1322, 1e-24
        %v1348 = vmax.f32 %v1324, 1e-24
        %v1349 = vmax.f32 %v1326, 1e-24
        %v1350 = vmax.f32 %v1328, 1e-24
        %v1351 = vmax.f32 %v1330, 1e-24
        %v1352 = vmax.f32 %v1332, 1e-24
        %v1353 = vmax.f32 %v1334, 1e-24
        %v1354 = vmax.f32 %v1336, 1e-24
        %v1355 = vmax.f32 %v1338, 1e-24
        %v1356 = vmax.f32 %v1340, 1e-24
        %v1357 = vrsqrt.pop %v1341
        %v1358 = vrsqrt.pop %v1342
        %v1359 = vrsqrt.pop %v1343
        %v1360 = vrsqrt.pop %v1344
        %v1361 = vrsqrt.pop %v1345
        %v1362 = vrsqrt.pop %v1346
        %v1363 = vrsqrt.pop %v1347
        %v1364 = vrsqrt.pop %v1348
        %v1365 = vrsqrt.pop %v1349
        %v1366 = vrsqrt.pop %v1350
        %v1367 = vrsqrt.pop %v1351
        %v1368 = vrsqrt.pop %v1352
        %v1369 = vrsqrt.pop %v1353
        %v1370 = vrsqrt.pop %v1354
        %v1371 = vrsqrt.pop %v1355
        %v1372 = vrsqrt.pop %v1356
        %v1373 = vmul.f32 %v1199, %v1357
        %v1374 = vmul.f32 %v1203, %v1358
        %v1375 = vmul.f32 %v1209, %v1359
        %v1376 = vmul.f32 %v1213, %v1360
        %v1377 = vmul.f32 %v1219, %v1361
        %v1378 = vmul.f32 %v1223, %v1362
        %v1379 = vmul.f32 %v1229, %v1363
        %v1380 = vmul.f32 %v1233, %v1364
        %v1381 = vmul.f32 %v1239, %v1365
        %v1382 = vmul.f32 %v1243, %v1366
        %v1383 = vmul.f32 %v1249, %v1367
        %v1384 = vmul.f32 %v1253, %v1368
        %v1385 = vmul.f32 %v1259, %v1369
        %v1386 = vmul.f32 %v1263, %v1370
        %v1387 = vmul.f32 %v1269, %v1371
        %v1388 = vmul.f32 %v1273, %v1372
        %v1389 = vmul.f32 %v1201, %v1201
        %v1390 = vmul.f32 %v1205, %v1205
        %v1391 = vmul.f32 %v1211, %v1211
        %v1392 = vmul.f32 %v1215, %v1215
        %v1393 = vmul.f32 %v1221, %v1221
        %v1394 = vmul.f32 %v1225, %v1225
        %v1395 = vmul.f32 %v1231, %v1231
        %v1396 = vmul.f32 %v1235, %v1235
        %v1397 = vmul.f32 %v1241, %v1241
        %v1398 = vmul.f32 %v1245, %v1245
        %v1399 = vmul.f32 %v1251, %v1251
        %v1400 = vmul.f32 %v1255, %v1255
        %v1401 = vmul.f32 %v1261, %v1261
        %v1402 = vmul.f32 %v1265, %v1265
        %v1403 = vmul.f32 %v1271, %v1271
        %v1404 = vmul.f32 %v1275, %v1275
        %1405 = vadd.xlane.f32.xlu0 %v1389
        %v1406 = vpop.xlane.xlu0 %1405
        %1407 = vadd.xlane.f32.xlu0 %v1390
        %v1408 = vpop.xlane.xlu0 %1407
        %1409 = vadd.xlane.f32.xlu0 %v1391
        %v1410 = vpop.xlane.xlu0 %1409
        %1411 = vadd.xlane.f32.xlu0 %v1392
        %v1412 = vpop.xlane.xlu0 %1411
        %1413 = vadd.xlane.f32.xlu0 %v1393
        %v1414 = vpop.xlane.xlu0 %1413
        %1415 = vadd.xlane.f32.xlu0 %v1394
        %v1416 = vpop.xlane.xlu0 %1415
        %1417 = vadd.xlane.f32.xlu0 %v1395
        %v1418 = vpop.xlane.xlu0 %1417
        %1419 = vadd.xlane.f32.xlu0 %v1396
        %v1420 = vpop.xlane.xlu0 %1419
        %1421 = vadd.xlane.f32.xlu0 %v1397
        %v1422 = vpop.xlane.xlu0 %1421
        %1423 = vadd.xlane.f32.xlu0 %v1398
        %v1424 = vpop.xlane.xlu0 %1423
        %1425 = vadd.xlane.f32.xlu0 %v1399
        %v1426 = vpop.xlane.xlu0 %1425
        %1427 = vadd.xlane.f32.xlu0 %v1400
        %v1428 = vpop.xlane.xlu0 %1427
        %1429 = vadd.xlane.f32.xlu0 %v1401
        %v1430 = vpop.xlane.xlu0 %1429
        %1431 = vadd.xlane.f32.xlu0 %v1402
        %v1432 = vpop.xlane.xlu0 %1431
        %1433 = vadd.xlane.f32.xlu0 %v1403
        %v1434 = vpop.xlane.xlu0 %1433
        %1435 = vadd.xlane.f32.xlu0 %v1404
        %v1436 = vpop.xlane.xlu0 %1435
        %v1437 = vmax.f32 %v1406, 1e-24
        %v1438 = vmax.f32 %v1408, 1e-24
        %v1439 = vmax.f32 %v1410, 1e-24
        %v1440 = vmax.f32 %v1412, 1e-24
        %v1441 = vmax.f32 %v1414, 1e-24
        %v1442 = vmax.f32 %v1416, 1e-24
        %v1443 = vmax.f32 %v1418, 1e-24
        %v1444 = vmax.f32 %v1420, 1e-24
        %v1445 = vmax.f32 %v1422, 1e-24
        %v1446 = vmax.f32 %v1424, 1e-24
        %v1447 = vmax.f32 %v1426, 1e-24
        %v1448 = vmax.f32 %v1428, 1e-24
        %v1449 = vmax.f32 %v1430, 1e-24
        %v1450 = vmax.f32 %v1432, 1e-24
        %v1451 = vmax.f32 %v1434, 1e-24
        %v1452 = vmax.f32 %v1436, 1e-24
        %v1453 = vrsqrt.pop %v1437
        %v1454 = vrsqrt.pop %v1438
        %v1455 = vrsqrt.pop %v1439
        %v1456 = vrsqrt.pop %v1440
        %v1457 = vrsqrt.pop %v1441
        %v1458 = vrsqrt.pop %v1442
        %v1459 = vrsqrt.pop %v1443
        %v1460 = vrsqrt.pop %v1444
        %v1461 = vrsqrt.pop %v1445
        %v1462 = vrsqrt.pop %v1446
        %v1463 = vrsqrt.pop %v1447
        %v1464 = vrsqrt.pop %v1448
        %v1465 = vrsqrt.pop %v1449
        %v1466 = vrsqrt.pop %v1450
        %v1467 = vrsqrt.pop %v1451
        %v1468 = vrsqrt.pop %v1452
        %v1469 = vmul.f32 %v1201, %v1453
        %v1470 = vmul.f32 %v1205, %v1454
        %v1471 = vmul.f32 %v1211, %v1455
        %v1472 = vmul.f32 %v1215, %v1456
        %v1473 = vmul.f32 %v1221, %v1457
        %v1474 = vmul.f32 %v1225, %v1458
        %v1475 = vmul.f32 %v1231, %v1459
        %v1476 = vmul.f32 %v1235, %v1460
        %v1477 = vmul.f32 %v1241, %v1461
        %v1478 = vmul.f32 %v1245, %v1462
        %v1479 = vmul.f32 %v1251, %v1463
        %v1480 = vmul.f32 %v1255, %v1464
        %v1481 = vmul.f32 %v1261, %v1465
        %v1482 = vmul.f32 %v1265, %v1466
        %v1483 = vmul.f32 %v1271, %v1467
        %v1484 = vmul.f32 %v1275, %v1468
        %v1485 = vmul.f32 %v1277, %v1277
        %v1486 = vmul.f32 %v1278, %v1278
        %v1487 = vmul.f32 %v1279, %v1279
        %v1488 = vmul.f32 %v1280, %v1280
        %v1489 = vmul.f32 %v1281, %v1281
        %v1490 = vmul.f32 %v1282, %v1282
        %v1491 = vmul.f32 %v1283, %v1283
        %v1492 = vmul.f32 %v1284, %v1284
        %v1493 = vmul.f32 %v1285, %v1285
        %v1494 = vmul.f32 %v1286, %v1286
        %v1495 = vmul.f32 %v1287, %v1287
        %v1496 = vmul.f32 %v1288, %v1288
        %v1497 = vmul.f32 %v1289, %v1289
        %v1498 = vmul.f32 %v1290, %v1290
        %v1499 = vmul.f32 %v1291, %v1291
        %v1500 = vmul.f32 %v1292, %v1292
        %1501 = vadd.xlane.f32.xlu0 %v1485
        %v1502 = vpop.xlane.xlu0 %1501
        %1503 = vadd.xlane.f32.xlu0 %v1486
        %v1504 = vpop.xlane.xlu0 %1503
        %1505 = vadd.xlane.f32.xlu0 %v1487
        %v1506 = vpop.xlane.xlu0 %1505
        %1507 = vadd.xlane.f32.xlu0 %v1488
        %v1508 = vpop.xlane.xlu0 %1507
        %1509 = vadd.xlane.f32.xlu0 %v1489
        %v1510 = vpop.xlane.xlu0 %1509
        %1511 = vadd.xlane.f32.xlu0 %v1490
        %v1512 = vpop.xlane.xlu0 %1511
        %1513 = vadd.xlane.f32.xlu0 %v1491
        %v1514 = vpop.xlane.xlu0 %1513
        %1515 = vadd.xlane.f32.xlu0 %v1492
        %v1516 = vpop.xlane.xlu0 %1515
        %1517 = vadd.xlane.f32.xlu0 %v1493
        %v1518 = vpop.xlane.xlu0 %1517
        %1519 = vadd.xlane.f32.xlu0 %v1494
        %v1520 = vpop.xlane.xlu0 %1519
        %1521 = vadd.xlane.f32.xlu0 %v1495
        %v1522 = vpop.xlane.xlu0 %1521
        %1523 = vadd.xlane.f32.xlu0 %v1496
        %v1524 = vpop.xlane.xlu0 %1523
        %1525 = vadd.xlane.f32.xlu0 %v1497
        %v1526 = vpop.xlane.xlu0 %1525
        %1527 = vadd.xlane.f32.xlu0 %v1498
        %v1528 = vpop.xlane.xlu0 %1527
        %1529 = vadd.xlane.f32.xlu0 %v1499
        %v1530 = vpop.xlane.xlu0 %1529
        %1531 = vadd.xlane.f32.xlu0 %v1500
        %v1532 = vpop.xlane.xlu0 %1531
        %v1533 = vmax.f32 %v1502, 1e-24
        %v1534 = vmax.f32 %v1504, 1e-24
        %v1535 = vmax.f32 %v1506, 1e-24
        %v1536 = vmax.f32 %v1508, 1e-24
        %v1537 = vmax.f32 %v1510, 1e-24
        %v1538 = vmax.f32 %v1512, 1e-24
        %v1539 = vmax.f32 %v1514, 1e-24
        %v1540 = vmax.f32 %v1516, 1e-24
        %v1541 = vmax.f32 %v1518, 1e-24
        %v1542 = vmax.f32 %v1520, 1e-24
        %v1543 = vmax.f32 %v1522, 1e-24
        %v1544 = vmax.f32 %v1524, 1e-24
        %v1545 = vmax.f32 %v1526, 1e-24
        %v1546 = vmax.f32 %v1528, 1e-24
        %v1547 = vmax.f32 %v1530, 1e-24
        %v1548 = vmax.f32 %v1532, 1e-24
        %v1549 = vrsqrt.pop %v1533
        %v1550 = vrsqrt.pop %v1534
        %v1551 = vrsqrt.pop %v1535
        %v1552 = vrsqrt.pop %v1536
        %v1553 = vrsqrt.pop %v1537
        %v1554 = vrsqrt.pop %v1538
        %v1555 = vrsqrt.pop %v1539
        %v1556 = vrsqrt.pop %v1540
        %v1557 = vrsqrt.pop %v1541
        %v1558 = vrsqrt.pop %v1542
        %v1559 = vrsqrt.pop %v1543
        %v1560 = vrsqrt.pop %v1544
        %v1561 = vrsqrt.pop %v1545
        %v1562 = vrsqrt.pop %v1546
        %v1563 = vrsqrt.pop %v1547
        %v1564 = vrsqrt.pop %v1548
        %v1565 = vmul.f32 %v1277, %v1549
        %v1566 = vmul.f32 %v1278, %v1550
        %v1567 = vmul.f32 %v1279, %v1551
        %v1568 = vmul.f32 %v1280, %v1552
        %v1569 = vmul.f32 %v1281, %v1553
        %v1570 = vmul.f32 %v1282, %v1554
        %v1571 = vmul.f32 %v1283, %v1555
        %v1572 = vmul.f32 %v1284, %v1556
        %v1573 = vmul.f32 %v1285, %v1557
        %v1574 = vmul.f32 %v1286, %v1558
        %v1575 = vmul.f32 %v1287, %v1559
        %v1576 = vmul.f32 %v1288, %v1560
        %v1577 = vmul.f32 %v1289, %v1561
        %v1578 = vmul.f32 %v1290, %v1562
        %v1579 = vmul.f32 %v1291, %v1563
        %v1580 = vmul.f32 %v1292, %v1564
        %1581 = vst [vmem:[%s325] sm:$0xff] %v1565
        %1582 = vst [vmem:[%s325 + $0x18] sm:$0xff] %v1566
        %1583 = vst [vmem:[%s325 + $0x30] sm:$0xff] %v1567
        %1584 = vst [vmem:[%s325 + $0x48] sm:$0xff] %v1568
        %1585 = vst [vmem:[%s325 + $0x60] sm:$0xff] %v1569
        %1586 = vst [vmem:[%s325 + $0x78] sm:$0xff] %v1570
        %1587 = vst [vmem:[%s325 + $0x90] sm:$0xff] %v1571
        %1588 = vst [vmem:[%s325 + $0xa8] sm:$0xff] %v1572
        %1589 = vst [vmem:[%s325 + $0xc0] sm:$0xff] %v1573
        %1590 = vst [vmem:[%s325 + $0xd8] sm:$0xff] %v1574
        %1591 = vst [vmem:[%s325 + $0xf0] sm:$0xff] %v1575
        %1592 = vst [vmem:[%s325 + $0x108] sm:$0xff] %v1576
        %1593 = vst [vmem:[%s325 + $0x120] sm:$0xff] %v1577
        %1594 = vst [vmem:[%s325 + $0x138] sm:$0xff] %v1578
        %1595 = vst [vmem:[%s325 + $0x150] sm:$0xff] %v1579
        %1596 = vst [vmem:[%s325 + $0x168] sm:$0xff] %v1580
        %1597 = vst [vmem:[%s325 + $0x8] sm:$0xff] %v1373
        %1598 = vst [vmem:[%s325 + $0x20] sm:$0xff] %v1374
        %1599 = vst [vmem:[%s325 + $0x38] sm:$0xff] %v1375
        %1600 = vst [vmem:[%s325 + $0x50] sm:$0xff] %v1376
        %1601 = vst [vmem:[%s325 + $0x68] sm:$0xff] %v1377
        %1602 = vst [vmem:[%s325 + $0x80] sm:$0xff] %v1378
        %1603 = vst [vmem:[%s325 + $0x98] sm:$0xff] %v1379
        %1604 = vst [vmem:[%s325 + $0xb0] sm:$0xff] %v1380
        %1605 = vst [vmem:[%s325 + $0xc8] sm:$0xff] %v1381
        %1606 = vst [vmem:[%s325 + $0xe0] sm:$0xff] %v1382
        %1607 = vst [vmem:[%s325 + $0xf8] sm:$0xff] %v1383
        %1608 = vst [vmem:[%s325 + $0x110] sm:$0xff] %v1384
        %1609 = vst [vmem:[%s325 + $0x128] sm:$0xff] %v1385
        %1610 = vst [vmem:[%s325 + $0x140] sm:$0xff] %v1386
        %1611 = vst [vmem:[%s325 + $0x158] sm:$0xff] %v1387
        %1612 = vst [vmem:[%s325 + $0x170] sm:$0xff] %v1388
        %1613 = vst [vmem:[%s325 + $0x10] sm:$0xff] %v1469
        %1614 = vst [vmem:[%s325 + $0x28] sm:$0xff] %v1470
        %1615 = vst [vmem:[%s325 + $0x40] sm:$0xff] %v1471
        %1616 = vst [vmem:[%s325 + $0x58] sm:$0xff] %v1472
        %1617 = vst [vmem:[%s325 + $0x70] sm:$0xff] %v1473
        %1618 = vst [vmem:[%s325 + $0x88] sm:$0xff] %v1474
        %1619 = vst [vmem:[%s325 + $0xa0] sm:$0xff] %v1475
        %1620 = vst [vmem:[%s325 + $0xb8] sm:$0xff] %v1476
        %1621 = vst [vmem:[%s325 + $0xd0] sm:$0xff] %v1477
        %1622 = vst [vmem:[%s325 + $0xe8] sm:$0xff] %v1478
        %1623 = vst [vmem:[%s325 + $0x100] sm:$0xff] %v1479
        %1624 = vst [vmem:[%s325 + $0x118] sm:$0xff] %v1480
        %1625 = vst [vmem:[%s325 + $0x130] sm:$0xff] %v1481
        %1626 = vst [vmem:[%s325 + $0x148] sm:$0xff] %v1482
        %1627 = vst [vmem:[%s325 + $0x160] sm:$0xff] %v1483
        %1628 = vst [vmem:[%s325 + $0x178] sm:$0xff] %v1484
        %s1629 = sand.u32 %s149, 1
        %s1630 = scalar_lea.sflag [#allocation5], %s1629
        %s1631 = sand.u32 %s149, 1
        %s1632 = smul.addr %s1631, 384
        %s1633 = scalar_lea.vmem [#allocation12], %s1632
        // Predicated region
        $region61: #{tpu_custom_call.1} parent=39 // pred_check
          %p1634 = pneg %p159
        $region62: #{tpu_custom_call.1} parent=39 // pred_check_branch
          %1636 = sbr.rel (%p1634) target = $region64
        $region63: #{tpu_custom_call.1} parent=39 // pred_region
          %s1637 = smul.u32 16, %s26
          %s1639 = ssub.s32 6144, 6144
          %1640 = vsyncadd %s1630, %s1639
          %s1641 = smul.addr %s1637, 3
          %s1642 = smul.addr %s1641, 128
          %s1643 = scalar_lea.hbm %s5, %s1642
          %s1644 = sshll.u32 %s1633, 4
          %s1645 = int_to_ptr.vmem [resolvable:$true] %s1644
          %1650 = dma.vmem_to_hbm [thread:$0]  %s1645, 6144, %s1643, %s1630, 384, 384, 24
        $region64: #{tpu_custom_call.1} parent=39 // pred_fallthru
          _
      $region40: #{tpu_custom_call.1} parent=5 // pred_fallthru
        _
      %p1651 = scmp.le.s32.totalorder 2, %s21
      // Predicated region
      $region65: #{tpu_custom_call.1} parent=5 // pred_check
        %p1652 = pneg %p1651
      $region66: #{tpu_custom_call.1} parent=5 // pred_check_branch
        %1654 = sbr.rel (%p1652) target = $region68
      $region67: #{tpu_custom_call.1} parent=5 // pred_region
        %s1655 = ssub.s32 %s21, 2
        // Predicated region
        $region69: #{tpu_custom_call.1} parent=67 // pred_check
          %p1656 = pneg %p165
        $region70: #{tpu_custom_call.1} parent=67 // pred_check_branch
          %1658 = sbr.rel (%p1656) target = $region72
        $region71: #{tpu_custom_call.1} parent=67 // pred_region
          %s1659 = sand.u32 %s150, 1
          %s1660 = scalar_lea.sflag [#allocation5], %s1659
          %s1661 = sand.u32 %s150, 1
          %s1662 = smul.addr %s1661, 384
          %s1663 = scalar_lea.vmem [#allocation12], %s1662
          %1664 = dma.done %s1660, 6144
        $region72: #{tpu_custom_call.1} parent=67 // pred_fallthru
          _
      $region68: #{tpu_custom_call.1} parent=5 // pred_fallthru
        _
    $region6: #{tpu_custom_call.1} parent=1 // loop_footer
      %s25 = sadd.s32 1, %s21
    $region7: #{tpu_custom_call.1} parent=1 // loop_footer_branch
      %20 = sbr.rel target = $region3
    $region8: #{tpu_custom_call.1} parent=1 // loop_exit
      _
    %1665 = vsyncpa [#allocation4], 1
    %s1666 = scalar_lea.sflag [#allocation4], 1
    %1667 = vsyncpa %s1666, 1
    %1668 = vsyncpa [#allocation7], 1
    %s1669 = scalar_lea.sflag [#allocation7], 1
    %1670 = vsyncpa %s1669, 1
    %1671 = vsyncpa [#allocation10], 1
    %1672 = vsyncpa [#allocation5], 1
    %s1673 = scalar_lea.sflag [#allocation5], 1
    %1674 = vsyncpa %s1673, 1

</llo_original>
